<compile_context>
chip_gen: v5e
topology: v5e:2x2
jax: 0.10.0
libtpu: 0.0.40
codegen_flags: <defaults>
</compile_context>

<pallas_src>
import jax
import jax.numpy as jnp
from jax.experimental import pallas as pl
from jax.experimental.pallas import tpu as pltpu


# tap order matches the HWIO weight flattening: t = (dy + 1) * 3 + (dx + 1)
_TAPS = tuple((dy, dx) for dy in (-1, 0, 1) for dx in (-1, 0, 1))
_CENTER = 4  # _TAPS[4] == (0, 0)


def _make_residual_kernel(C, L, W):
    """Kernel body for one (C, L) pixel block (L = images_per_block * H * W)."""

    def kernel(x_ref, m_ref, w1_ref, b1_ref, w2_ref, b2_ref, o_ref):
        # x_ref : (C, L)      input pixels, channel-major, lane-dense
        # m_ref : (8, L) f32  0/1 validity for the 8 off-center taps (periodic per
        #                     image; same block for every grid step).  It zeroes both
        #                     the out-of-image taps and the lanes pltpu.roll wraps
        #                     across image/block edges.
        # wK_ref: (9, C, C)   per-tap conv weights, BN scale pre-folded, (Cout, Cin)
        # bK_ref: (C, 1)      folded BatchNorm bias
        # o_ref : (C, L)      output block
        x = x_ref[...]                                        # (C, L) f32
        masks = m_ref[...]                                    # (8, L) f32

        def conv3x3_bias_relu(inp, w_ref, b_ref):
            # Small-C path: accumulate nine (C,C)x(C,L) MXU dots in f32.  Each tap is
            # an in-register lane rotation (XLU) — no halo scratch, no im2col buffer.
            acc = jnp.dot(w_ref[_CENTER], inp,
                          preferred_element_type=jnp.float32)  # center tap
            mi = 0
            for t, (dy, dx) in enumerate(_TAPS):
                if (dy, dx) == (0, 0):
                    continue
                s = dy * W + dx                                # lane offset of the tap
                v = pltpu.roll(inp, shift=(-s) % L, axis=1) * masks[mi:mi + 1, :]
                acc = acc + jnp.dot(w_ref[t], v,
                                    preferred_element_type=jnp.float32)
                mi += 1
            return jnp.maximum(acc + b_ref[...], 0.0)          # folded-BN bias + ReLU

        h1 = conv3x3_bias_relu(x, w1_ref, b1_ref)
        h2 = conv3x3_bias_relu(h1, w2_ref, b2_ref)
        o_ref[...] = (x + h2).astype(o_ref.dtype)              # residual add

    return kernel


def fold_bn(gamma, beta, mean, var, eps=1e-5):
    """Eval-mode BatchNorm -> per-channel (scale, bias)."""
    scale = gamma / jnp.sqrt(var + eps)
    bias = beta - mean * scale
    return scale, bias


def pack_conv_bn_taps(w_hwio, scale):
    """(3,3,Cin,Cout) HWIO conv weight + BN scale -> (9, Cout, Cin) per-tap weights."""
    kh, kw, cin, cout = w_hwio.shape
    w = w_hwio * scale[None, None, None, :]          # fold BN scale on output channels
    w = w.reshape(kh * kw, cin, cout)                # tap t = ky*3 + kx
    return jnp.transpose(w, (0, 2, 1)).astype(jnp.float32)


def make_tap_masks(L, H, W):
    """(8, L) f32 0/1 validity for the 8 off-center taps over one block of pixels.

    Periodic per image (period H*W), so it is valid for any block made of whole
    images.  It also zeroes every lane a roll-based tap would wrap across an image
    or block boundary.
    """
    P = H * W
    pp = jnp.arange(L, dtype=jnp.int32) % P
    hh = pp // W
    ww = pp % W
    rows = []
    for dy, dx in _TAPS:
        if (dy, dx) == (0, 0):
            continue
        ok = jnp.ones((L,), dtype=bool)
        if dy == -1:
            ok = ok & (hh >= 1)
        if dy == 1:
            ok = ok & (hh <= H - 2)
        if dx == -1:
            ok = ok & (ww >= 1)
        if dx == 1:
            ok = ok & (ww <= W - 2)
        rows.append(ok)
    return jnp.stack(rows, axis=0).astype(jnp.float32)


def _num_tensorcores():
    """2 TensorCores per chip on v7x; v5e/v6e have 1 (grid split only helps on 2-TC parts)."""
    try:
        kind = jax.devices()[0].device_kind.lower()
    except Exception:
        return 1
    return 2 if "v7" in kind else 1


def residual_forward(x_nchw, w1_hwio, s1, b1, w2_hwio, s2, b2):
    N, C, H, W = x_nchw.shape
    P = H * W
    n_tc = _num_tensorcores()
    G = n_tc if (n_tc > 1 and N % n_tc == 0) else 1   # G=1 on 1-TC parts (v5e/v6e)
    NB = N // G
    L = NB * P
    if L % 128 != 0:                                   # keep output stores lane-dense
        G, NB, L = 1, N, N * P

    # Wrapper-side layout plumbing (one-off): channel-major, pixels on the lane axis.
    xf = jnp.transpose(x_nchw, (1, 0, 2, 3)).reshape(C, N * P).astype(jnp.float32)
    masks = make_tap_masks(L, H, W)                    # periodic -> one block, reused
    wp1 = pack_conv_bn_taps(w1_hwio, s1)               # BN scale folded into weights
    wp2 = pack_conv_bn_taps(w2_hwio, s2)
    bb1 = b1.reshape(C, 1).astype(jnp.float32)
    bb2 = b2.reshape(C, 1).astype(jnp.float32)

    grid_spec = pltpu.PrefetchScalarGridSpec(
        num_scalar_prefetch=0,
        grid=(G,),
        in_specs=[
            pl.BlockSpec((C, L), lambda i: (0, i)),          # x block
            pl.BlockSpec((8, L), lambda i: (0, 0)),          # tap masks (shared block)
            pl.BlockSpec((9, C, C), lambda i: (0, 0, 0)),    # conv1 weights (BN folded)
            pl.BlockSpec((C, 1), lambda i: (0, 0)),          # conv1 bias
            pl.BlockSpec((9, C, C), lambda i: (0, 0, 0)),    # conv2 weights (BN folded)
            pl.BlockSpec((C, 1), lambda i: (0, 0)),          # conv2 bias
        ],
        out_specs=pl.BlockSpec((C, L), lambda i: (0, i)),
    )
    out_flat = pl.pallas_call(
        _make_residual_kernel(C, L, W),
        out_shape=jax.ShapeDtypeStruct((C, N * P), jnp.float32),
        grid_spec=grid_spec,
        compiler_params=pltpu.CompilerParams(
            dimension_semantics=("parallel",)),
    )(xf, masks, wp1, bb1, wp2, bb2)
    # back to NCHW
    out = jnp.transpose(out_flat.reshape(C, N, H, W), (1, 0, 2, 3))
    return out.astype(x_nchw.dtype)


def ref_forward(x_nchw, w1_hwio, s1, b1, w2_hwio, s2, b2):
    x = jnp.transpose(x_nchw, (0, 2, 3, 1))                  # NHWC

    def block(h, w, s, b):
        y = jax.lax.conv_general_dilated(
            h, w, window_strides=(1, 1), padding="SAME",
            dimension_numbers=("NHWC", "HWIO", "NHWC"))
        return jnp.maximum(y * s[None, None, None, :] + b[None, None, None, :], 0.0)

    h = block(block(x, w1_hwio, s1, b1), w2_hwio, s2, b2)
    return jnp.transpose(x + h, (0, 3, 1, 2))                # back to NCHW


if __name__ == "__main__":
    key = jax.random.PRNGKey(0)
    N, C, H, W = 2, 16, 16, 16          # small NCHW shape, as the PyTorch module implies
    ks = jax.random.split(key, 11)

    x_nchw = jax.random.normal(ks[0], (N, C, H, W), jnp.float32)

    # conv weights in PyTorch layout (Cout, Cin, 3, 3), then -> HWIO
    w1_oihw = jax.random.normal(ks[1], (C, C, 3, 3), jnp.float32) * 0.1
    w2_oihw = jax.random.normal(ks[2], (C, C, 3, 3), jnp.float32) * 0.1
    w1_hwio = jnp.transpose(w1_oihw, (2, 3, 1, 0))
    w2_hwio = jnp.transpose(w2_oihw, (2, 3, 1, 0))

    # eval-mode BatchNorm parameters, folded into per-channel scale/bias
    g1 = 1.0 + 0.1 * jax.random.normal(ks[3], (C,), jnp.float32)
    be1 = 0.1 * jax.random.normal(ks[4], (C,), jnp.float32)
    m1 = 0.1 * jax.random.normal(ks[5], (C,), jnp.float32)
    v1 = jnp.abs(jax.random.normal(ks[6], (C,), jnp.float32)) + 1.0
    g2 = 1.0 + 0.1 * jax.random.normal(ks[7], (C,), jnp.float32)
    be2 = 0.1 * jax.random.normal(ks[8], (C,), jnp.float32)
    m2 = 0.1 * jax.random.normal(ks[9], (C,), jnp.float32)
    v2 = jnp.abs(jax.random.normal(ks[10], (C,), jnp.float32)) + 1.0
    s1, b1 = fold_bn(g1, be1, m1, v1)
    s2, b2 = fold_bn(g2, be2, m2, v2)

    out = residual_forward(x_nchw, w1_hwio, s1, b1, w2_hwio, s2, b2)
    out = jax.block_until_ready(out)

    ref = ref_forward(x_nchw, w1_hwio, s1, b1, w2_hwio, s2, b2)
    assert jnp.allclose(out, ref, rtol=1e-4, atol=1e-4), "mismatch vs reference"

    print("KERNEL_OK")
</pallas_src>

<mosaic_0001>
module attributes {stable_mosaic.version = 11 : i64} {
  func.func @kernel(%arg0: i32, %arg1: memref<16x512xf32, #tpu.memory_space<vmem>>, %arg2: memref<8x512xf32, #tpu.memory_space<vmem>>, %arg3: memref<9x16x16xf32, #tpu.memory_space<vmem>>, %arg4: memref<16x1xf32, #tpu.memory_space<vmem>>, %arg5: memref<9x16x16xf32, #tpu.memory_space<vmem>>, %arg6: memref<16x1xf32, #tpu.memory_space<vmem>>, %arg7: memref<16x512xf32, #tpu.memory_space<vmem>>) attributes {dimension_semantics = [#tpu.dimension_semantics<parallel>], iteration_bounds = array<i64: 1>, scalar_prefetch = 0 : i64, scratch_operands = 0 : i64, tpu.core_type = #tpu.core_type<tc>, window_params = [{transform_indices = @transform_0, window_bounds = array<i64: 16, 512>}, {pipeline_mode = #tpu.pipeline_mode<synchronous>, transform_indices = @transform_1, window_bounds = array<i64: 8, 512>}, {pipeline_mode = #tpu.pipeline_mode<synchronous>, transform_indices = @transform_2, window_bounds = array<i64: 9, 16, 16>}, {pipeline_mode = #tpu.pipeline_mode<synchronous>, transform_indices = @transform_3, window_bounds = array<i64: 16, 1>}, {pipeline_mode = #tpu.pipeline_mode<synchronous>, transform_indices = @transform_4, window_bounds = array<i64: 9, 16, 16>}, {pipeline_mode = #tpu.pipeline_mode<synchronous>, transform_indices = @transform_5, window_bounds = array<i64: 16, 1>}, {transform_indices = @transform_6, window_bounds = array<i64: 16, 512>}]} {
    %c0 = arith.constant 0 : index
    %c0_0 = arith.constant 0 : index
    %0 = vector.load %arg1[%c0, %c0_0] : memref<16x512xf32, #tpu.memory_space<vmem>>, vector<16x512xf32>
    %c0_1 = arith.constant 0 : index
    %c0_2 = arith.constant 0 : index
    %1 = vector.load %arg2[%c0_1, %c0_2] : memref<8x512xf32, #tpu.memory_space<vmem>>, vector<8x512xf32>
    %c4 = arith.constant 4 : index
    %c0_3 = arith.constant 0 : index
    %c0_4 = arith.constant 0 : index
    %2 = vector.load %arg3[%c4, %c0_3, %c0_4] : memref<9x16x16xf32, #tpu.memory_space<vmem>>, vector<1x16x16xf32>
    %3 = vector.shape_cast %2 : vector<1x16x16xf32> to vector<16x16xf32>
    %cst = arith.constant dense<0.000000e+00> : vector<16x512xf32>
    %4 = tpu.matmul %3, %0, %cst {dimension_numbers = #tpu.dot_dimension_numbers<[1], [0], [0], [1], [0, 0, 1, 1], [], []>} : vector<16x16xf32>, vector<16x512xf32>, vector<16x512xf32> -> vector<16x512xf32>
    %c17_i32 = arith.constant 17 : i32
    %5 = tpu.dynamic_rotate %0 by %c17_i32 dim 1 : vector<16x512xf32>, i32 -> vector<16x512xf32>
    %6 = vector.extract_strided_slice %1 {offsets = [0, 0], sizes = [1, 512], strides = [1, 1]} : vector<8x512xf32> to vector<1x512xf32>
    %7 = vector.broadcast %6 : vector<1x512xf32> to vector<16x512xf32>
    %8 = arith.mulf %5, %7 : vector<16x512xf32>
    %c0_5 = arith.constant 0 : index
    %c0_6 = arith.constant 0 : index
    %c0_7 = arith.constant 0 : index
    %9 = vector.load %arg3[%c0_5, %c0_6, %c0_7] : memref<9x16x16xf32, #tpu.memory_space<vmem>>, vector<1x16x16xf32>
    %10 = vector.shape_cast %9 : vector<1x16x16xf32> to vector<16x16xf32>
    %cst_8 = arith.constant dense<0.000000e+00> : vector<16x512xf32>
    %11 = tpu.matmul %10, %8, %cst_8 {dimension_numbers = #tpu.dot_dimension_numbers<[1], [0], [0], [1], [0, 0, 1, 1], [], []>} : vector<16x16xf32>, vector<16x512xf32>, vector<16x512xf32> -> vector<16x512xf32>
    %12 = arith.addf %4, %11 : vector<16x512xf32>
    %c16_i32 = arith.constant 16 : i32
    %13 = tpu.dynamic_rotate %0 by %c16_i32 dim 1 : vector<16x512xf32>, i32 -> vector<16x512xf32>
    %14 = vector.extract_strided_slice %1 {offsets = [1, 0], sizes = [1, 512], strides = [1, 1]} : vector<8x512xf32> to vector<1x512xf32>
    %15 = vector.broadcast %14 : vector<1x512xf32> to vector<16x512xf32>
    %16 = arith.mulf %13, %15 : vector<16x512xf32>
    %c1 = arith.constant 1 : index
    %c0_9 = arith.constant 0 : index
    %c0_10 = arith.constant 0 : index
    %17 = vector.load %arg3[%c1, %c0_9, %c0_10] : memref<9x16x16xf32, #tpu.memory_space<vmem>>, vector<1x16x16xf32>
    %18 = vector.shape_cast %17 : vector<1x16x16xf32> to vector<16x16xf32>
    %cst_11 = arith.constant dense<0.000000e+00> : vector<16x512xf32>
    %19 = tpu.matmul %18, %16, %cst_11 {dimension_numbers = #tpu.dot_dimension_numbers<[1], [0], [0], [1], [0, 0, 1, 1], [], []>} : vector<16x16xf32>, vector<16x512xf32>, vector<16x512xf32> -> vector<16x512xf32>
    %20 = arith.addf %12, %19 : vector<16x512xf32>
    %c15_i32 = arith.constant 15 : i32
    %21 = tpu.dynamic_rotate %0 by %c15_i32 dim 1 : vector<16x512xf32>, i32 -> vector<16x512xf32>
    %22 = vector.extract_strided_slice %1 {offsets = [2, 0], sizes = [1, 512], strides = [1, 1]} : vector<8x512xf32> to vector<1x512xf32>
    %23 = vector.broadcast %22 : vector<1x512xf32> to vector<16x512xf32>
    %24 = arith.mulf %21, %23 : vector<16x512xf32>
    %c2 = arith.constant 2 : index
    %c0_12 = arith.constant 0 : index
    %c0_13 = arith.constant 0 : index
    %25 = vector.load %arg3[%c2, %c0_12, %c0_13] : memref<9x16x16xf32, #tpu.memory_space<vmem>>, vector<1x16x16xf32>
    %26 = vector.shape_cast %25 : vector<1x16x16xf32> to vector<16x16xf32>
    %cst_14 = arith.constant dense<0.000000e+00> : vector<16x512xf32>
    %27 = tpu.matmul %26, %24, %cst_14 {dimension_numbers = #tpu.dot_dimension_numbers<[1], [0], [0], [1], [0, 0, 1, 1], [], []>} : vector<16x16xf32>, vector<16x512xf32>, vector<16x512xf32> -> vector<16x512xf32>
    %28 = arith.addf %20, %27 : vector<16x512xf32>
    %c1_i32 = arith.constant 1 : i32
    %29 = tpu.dynamic_rotate %0 by %c1_i32 dim 1 : vector<16x512xf32>, i32 -> vector<16x512xf32>
    %30 = vector.extract_strided_slice %1 {offsets = [3, 0], sizes = [1, 512], strides = [1, 1]} : vector<8x512xf32> to vector<1x512xf32>
    %31 = vector.broadcast %30 : vector<1x512xf32> to vector<16x512xf32>
    %32 = arith.mulf %29, %31 : vector<16x512xf32>
    %c3 = arith.constant 3 : index
    %c0_15 = arith.constant 0 : index
    %c0_16 = arith.constant 0 : index
    %33 = vector.load %arg3[%c3, %c0_15, %c0_16] : memref<9x16x16xf32, #tpu.memory_space<vmem>>, vector<1x16x16xf32>
    %34 = vector.shape_cast %33 : vector<1x16x16xf32> to vector<16x16xf32>
    %cst_17 = arith.constant dense<0.000000e+00> : vector<16x512xf32>
    %35 = tpu.matmul %34, %32, %cst_17 {dimension_numbers = #tpu.dot_dimension_numbers<[1], [0], [0], [1], [0, 0, 1, 1], [], []>} : vector<16x16xf32>, vector<16x512xf32>, vector<16x512xf32> -> vector<16x512xf32>
    %36 = arith.addf %28, %35 : vector<16x512xf32>
    %c511_i32 = arith.constant 511 : i32
    %37 = tpu.dynamic_rotate %0 by %c511_i32 dim 1 : vector<16x512xf32>, i32 -> vector<16x512xf32>
    %38 = vector.extract_strided_slice %1 {offsets = [4, 0], sizes = [1, 512], strides = [1, 1]} : vector<8x512xf32> to vector<1x512xf32>
    %39 = vector.broadcast %38 : vector<1x512xf32> to vector<16x512xf32>
    %40 = arith.mulf %37, %39 : vector<16x512xf32>
    %c5 = arith.constant 5 : index
    %c0_18 = arith.constant 0 : index
    %c0_19 = arith.constant 0 : index
    %41 = vector.load %arg3[%c5, %c0_18, %c0_19] : memref<9x16x16xf32, #tpu.memory_space<vmem>>, vector<1x16x16xf32>
    %42 = vector.shape_cast %41 : vector<1x16x16xf32> to vector<16x16xf32>
    %cst_20 = arith.constant dense<0.000000e+00> : vector<16x512xf32>
    %43 = tpu.matmul %42, %40, %cst_20 {dimension_numbers = #tpu.dot_dimension_numbers<[1], [0], [0], [1], [0, 0, 1, 1], [], []>} : vector<16x16xf32>, vector<16x512xf32>, vector<16x512xf32> -> vector<16x512xf32>
    %44 = arith.addf %36, %43 : vector<16x512xf32>
    %c497_i32 = arith.constant 497 : i32
    %45 = tpu.dynamic_rotate %0 by %c497_i32 dim 1 : vector<16x512xf32>, i32 -> vector<16x512xf32>
    %46 = vector.extract_strided_slice %1 {offsets = [5, 0], sizes = [1, 512], strides = [1, 1]} : vector<8x512xf32> to vector<1x512xf32>
    %47 = vector.broadcast %46 : vector<1x512xf32> to vector<16x512xf32>
    %48 = arith.mulf %45, %47 : vector<16x512xf32>
    %c6 = arith.constant 6 : index
    %c0_21 = arith.constant 0 : index
    %c0_22 = arith.constant 0 : index
    %49 = vector.load %arg3[%c6, %c0_21, %c0_22] : memref<9x16x16xf32, #tpu.memory_space<vmem>>, vector<1x16x16xf32>
    %50 = vector.shape_cast %49 : vector<1x16x16xf32> to vector<16x16xf32>
    %cst_23 = arith.constant dense<0.000000e+00> : vector<16x512xf32>
    %51 = tpu.matmul %50, %48, %cst_23 {dimension_numbers = #tpu.dot_dimension_numbers<[1], [0], [0], [1], [0, 0, 1, 1], [], []>} : vector<16x16xf32>, vector<16x512xf32>, vector<16x512xf32> -> vector<16x512xf32>
    %52 = arith.addf %44, %51 : vector<16x512xf32>
    %c496_i32 = arith.constant 496 : i32
    %53 = tpu.dynamic_rotate %0 by %c496_i32 dim 1 : vector<16x512xf32>, i32 -> vector<16x512xf32>
    %54 = vector.extract_strided_slice %1 {offsets = [6, 0], sizes = [1, 512], strides = [1, 1]} : vector<8x512xf32> to vector<1x512xf32>
    %55 = vector.broadcast %54 : vector<1x512xf32> to vector<16x512xf32>
    %56 = arith.mulf %53, %55 : vector<16x512xf32>
    %c7 = arith.constant 7 : index
    %c0_24 = arith.constant 0 : index
    %c0_25 = arith.constant 0 : index
    %57 = vector.load %arg3[%c7, %c0_24, %c0_25] : memref<9x16x16xf32, #tpu.memory_space<vmem>>, vector<1x16x16xf32>
    %58 = vector.shape_cast %57 : vector<1x16x16xf32> to vector<16x16xf32>
    %cst_26 = arith.constant dense<0.000000e+00> : vector<16x512xf32>
    %59 = tpu.matmul %58, %56, %cst_26 {dimension_numbers = #tpu.dot_dimension_numbers<[1], [0], [0], [1], [0, 0, 1, 1], [], []>} : vector<16x16xf32>, vector<16x512xf32>, vector<16x512xf32> -> vector<16x512xf32>
    %60 = arith.addf %52, %59 : vector<16x512xf32>
    %c495_i32 = arith.constant 495 : i32
    %61 = tpu.dynamic_rotate %0 by %c495_i32 dim 1 : vector<16x512xf32>, i32 -> vector<16x512xf32>
    %62 = vector.extract_strided_slice %1 {offsets = [7, 0], sizes = [1, 512], strides = [1, 1]} : vector<8x512xf32> to vector<1x512xf32>
    %63 = vector.broadcast %62 : vector<1x512xf32> to vector<16x512xf32>
    %64 = arith.mulf %61, %63 : vector<16x512xf32>
    %c8 = arith.constant 8 : index
    %c0_27 = arith.constant 0 : index
    %c0_28 = arith.constant 0 : index
    %65 = vector.load %arg3[%c8, %c0_27, %c0_28] : memref<9x16x16xf32, #tpu.memory_space<vmem>>, vector<1x16x16xf32>
    %66 = vector.shape_cast %65 : vector<1x16x16xf32> to vector<16x16xf32>
    %cst_29 = arith.constant dense<0.000000e+00> : vector<16x512xf32>
    %67 = tpu.matmul %66, %64, %cst_29 {dimension_numbers = #tpu.dot_dimension_numbers<[1], [0], [0], [1], [0, 0, 1, 1], [], []>} : vector<16x16xf32>, vector<16x512xf32>, vector<16x512xf32> -> vector<16x512xf32>
    %68 = arith.addf %60, %67 : vector<16x512xf32>
    %c0_30 = arith.constant 0 : index
    %c0_31 = arith.constant 0 : index
    %69 = vector.load %arg4[%c0_30, %c0_31] : memref<16x1xf32, #tpu.memory_space<vmem>>, vector<16x1xf32>
    %70 = vector.broadcast %69 : vector<16x1xf32> to vector<16x512xf32>
    %71 = arith.addf %68, %70 : vector<16x512xf32>
    %cst_32 = arith.constant 0.000000e+00 : f32
    %72 = vector.broadcast %cst_32 : f32 to vector<16x512xf32>
    %73 = arith.maximumf %71, %72 : vector<16x512xf32>
    %c4_33 = arith.constant 4 : index
    %c0_34 = arith.constant 0 : index
    %c0_35 = arith.constant 0 : index
    %74 = vector.load %arg5[%c4_33, %c0_34, %c0_35] : memref<9x16x16xf32, #tpu.memory_space<vmem>>, vector<1x16x16xf32>
    %75 = vector.shape_cast %74 : vector<1x16x16xf32> to vector<16x16xf32>
    %cst_36 = arith.constant dense<0.000000e+00> : vector<16x512xf32>
    %76 = tpu.matmul %75, %73, %cst_36 {dimension_numbers = #tpu.dot_dimension_numbers<[1], [0], [0], [1], [0, 0, 1, 1], [], []>} : vector<16x16xf32>, vector<16x512xf32>, vector<16x512xf32> -> vector<16x512xf32>
    %c17_i32_37 = arith.constant 17 : i32
    %77 = tpu.dynamic_rotate %73 by %c17_i32_37 dim 1 : vector<16x512xf32>, i32 -> vector<16x512xf32>
    %78 = vector.extract_strided_slice %1 {offsets = [0, 0], sizes = [1, 512], strides = [1, 1]} : vector<8x512xf32> to vector<1x512xf32>
    %79 = vector.broadcast %78 : vector<1x512xf32> to vector<16x512xf32>
    %80 = arith.mulf %77, %79 : vector<16x512xf32>
    %c0_38 = arith.constant 0 : index
    %c0_39 = arith.constant 0 : index
    %c0_40 = arith.constant 0 : index
    %81 = vector.load %arg5[%c0_38, %c0_39, %c0_40] : memref<9x16x16xf32, #tpu.memory_space<vmem>>, vector<1x16x16xf32>
    %82 = vector.shape_cast %81 : vector<1x16x16xf32> to vector<16x16xf32>
    %cst_41 = arith.constant dense<0.000000e+00> : vector<16x512xf32>
    %83 = tpu.matmul %82, %80, %cst_41 {dimension_numbers = #tpu.dot_dimension_numbers<[1], [0], [0], [1], [0, 0, 1, 1], [], []>} : vector<16x16xf32>, vector<16x512xf32>, vector<16x512xf32> -> vector<16x512xf32>
    %84 = arith.addf %76, %83 : vector<16x512xf32>
    %c16_i32_42 = arith.constant 16 : i32
    %85 = tpu.dynamic_rotate %73 by %c16_i32_42 dim 1 : vector<16x512xf32>, i32 -> vector<16x512xf32>
    %86 = vector.extract_strided_slice %1 {offsets = [1, 0], sizes = [1, 512], strides = [1, 1]} : vector<8x512xf32> to vector<1x512xf32>
    %87 = vector.broadcast %86 : vector<1x512xf32> to vector<16x512xf32>
    %88 = arith.mulf %85, %87 : vector<16x512xf32>
    %c1_43 = arith.constant 1 : index
    %c0_44 = arith.constant 0 : index
    %c0_45 = arith.constant 0 : index
    %89 = vector.load %arg5[%c1_43, %c0_44, %c0_45] : memref<9x16x16xf32, #tpu.memory_space<vmem>>, vector<1x16x16xf32>
    %90 = vector.shape_cast %89 : vector<1x16x16xf32> to vector<16x16xf32>
    %cst_46 = arith.constant dense<0.000000e+00> : vector<16x512xf32>
    %91 = tpu.matmul %90, %88, %cst_46 {dimension_numbers = #tpu.dot_dimension_numbers<[1], [0], [0], [1], [0, 0, 1, 1], [], []>} : vector<16x16xf32>, vector<16x512xf32>, vector<16x512xf32> -> vector<16x512xf32>
    %92 = arith.addf %84, %91 : vector<16x512xf32>
    %c15_i32_47 = arith.constant 15 : i32
    %93 = tpu.dynamic_rotate %73 by %c15_i32_47 dim 1 : vector<16x512xf32>, i32 -> vector<16x512xf32>
    %94 = vector.extract_strided_slice %1 {offsets = [2, 0], sizes = [1, 512], strides = [1, 1]} : vector<8x512xf32> to vector<1x512xf32>
    %95 = vector.broadcast %94 : vector<1x512xf32> to vector<16x512xf32>
    %96 = arith.mulf %93, %95 : vector<16x512xf32>
    %c2_48 = arith.constant 2 : index
    %c0_49 = arith.constant 0 : index
    %c0_50 = arith.constant 0 : index
    %97 = vector.load %arg5[%c2_48, %c0_49, %c0_50] : memref<9x16x16xf32, #tpu.memory_space<vmem>>, vector<1x16x16xf32>
    %98 = vector.shape_cast %97 : vector<1x16x16xf32> to vector<16x16xf32>
    %cst_51 = arith.constant dense<0.000000e+00> : vector<16x512xf32>
    %99 = tpu.matmul %98, %96, %cst_51 {dimension_numbers = #tpu.dot_dimension_numbers<[1], [0], [0], [1], [0, 0, 1, 1], [], []>} : vector<16x16xf32>, vector<16x512xf32>, vector<16x512xf32> -> vector<16x512xf32>
    %100 = arith.addf %92, %99 : vector<16x512xf32>
    %c1_i32_52 = arith.constant 1 : i32
    %101 = tpu.dynamic_rotate %73 by %c1_i32_52 dim 1 : vector<16x512xf32>, i32 -> vector<16x512xf32>
    %102 = vector.extract_strided_slice %1 {offsets = [3, 0], sizes = [1, 512], strides = [1, 1]} : vector<8x512xf32> to vector<1x512xf32>
    %103 = vector.broadcast %102 : vector<1x512xf32> to vector<16x512xf32>
    %104 = arith.mulf %101, %103 : vector<16x512xf32>
    %c3_53 = arith.constant 3 : index
    %c0_54 = arith.constant 0 : index
    %c0_55 = arith.constant 0 : index
    %105 = vector.load %arg5[%c3_53, %c0_54, %c0_55] : memref<9x16x16xf32, #tpu.memory_space<vmem>>, vector<1x16x16xf32>
    %106 = vector.shape_cast %105 : vector<1x16x16xf32> to vector<16x16xf32>
    %cst_56 = arith.constant dense<0.000000e+00> : vector<16x512xf32>
    %107 = tpu.matmul %106, %104, %cst_56 {dimension_numbers = #tpu.dot_dimension_numbers<[1], [0], [0], [1], [0, 0, 1, 1], [], []>} : vector<16x16xf32>, vector<16x512xf32>, vector<16x512xf32> -> vector<16x512xf32>
    %108 = arith.addf %100, %107 : vector<16x512xf32>
    %c511_i32_57 = arith.constant 511 : i32
    %109 = tpu.dynamic_rotate %73 by %c511_i32_57 dim 1 : vector<16x512xf32>, i32 -> vector<16x512xf32>
    %110 = vector.extract_strided_slice %1 {offsets = [4, 0], sizes = [1, 512], strides = [1, 1]} : vector<8x512xf32> to vector<1x512xf32>
    %111 = vector.broadcast %110 : vector<1x512xf32> to vector<16x512xf32>
    %112 = arith.mulf %109, %111 : vector<16x512xf32>
    %c5_58 = arith.constant 5 : index
    %c0_59 = arith.constant 0 : index
    %c0_60 = arith.constant 0 : index
    %113 = vector.load %arg5[%c5_58, %c0_59, %c0_60] : memref<9x16x16xf32, #tpu.memory_space<vmem>>, vector<1x16x16xf32>
    %114 = vector.shape_cast %113 : vector<1x16x16xf32> to vector<16x16xf32>
    %cst_61 = arith.constant dense<0.000000e+00> : vector<16x512xf32>
    %115 = tpu.matmul %114, %112, %cst_61 {dimension_numbers = #tpu.dot_dimension_numbers<[1], [0], [0], [1], [0, 0, 1, 1], [], []>} : vector<16x16xf32>, vector<16x512xf32>, vector<16x512xf32> -> vector<16x512xf32>
    %116 = arith.addf %108, %115 : vector<16x512xf32>
    %c497_i32_62 = arith.constant 497 : i32
    %117 = tpu.dynamic_rotate %73 by %c497_i32_62 dim 1 : vector<16x512xf32>, i32 -> vector<16x512xf32>
    %118 = vector.extract_strided_slice %1 {offsets = [5, 0], sizes = [1, 512], strides = [1, 1]} : vector<8x512xf32> to vector<1x512xf32>
    %119 = vector.broadcast %118 : vector<1x512xf32> to vector<16x512xf32>
    %120 = arith.mulf %117, %119 : vector<16x512xf32>
    %c6_63 = arith.constant 6 : index
    %c0_64 = arith.constant 0 : index
    %c0_65 = arith.constant 0 : index
    %121 = vector.load %arg5[%c6_63, %c0_64, %c0_65] : memref<9x16x16xf32, #tpu.memory_space<vmem>>, vector<1x16x16xf32>
    %122 = vector.shape_cast %121 : vector<1x16x16xf32> to vector<16x16xf32>
    %cst_66 = arith.constant dense<0.000000e+00> : vector<16x512xf32>
    %123 = tpu.matmul %122, %120, %cst_66 {dimension_numbers = #tpu.dot_dimension_numbers<[1], [0], [0], [1], [0, 0, 1, 1], [], []>} : vector<16x16xf32>, vector<16x512xf32>, vector<16x512xf32> -> vector<16x512xf32>
    %124 = arith.addf %116, %123 : vector<16x512xf32>
    %c496_i32_67 = arith.constant 496 : i32
    %125 = tpu.dynamic_rotate %73 by %c496_i32_67 dim 1 : vector<16x512xf32>, i32 -> vector<16x512xf32>
    %126 = vector.extract_strided_slice %1 {offsets = [6, 0], sizes = [1, 512], strides = [1, 1]} : vector<8x512xf32> to vector<1x512xf32>
    %127 = vector.broadcast %126 : vector<1x512xf32> to vector<16x512xf32>
    %128 = arith.mulf %125, %127 : vector<16x512xf32>
    %c7_68 = arith.constant 7 : index
    %c0_69 = arith.constant 0 : index
    %c0_70 = arith.constant 0 : index
    %129 = vector.load %arg5[%c7_68, %c0_69, %c0_70] : memref<9x16x16xf32, #tpu.memory_space<vmem>>, vector<1x16x16xf32>
    %130 = vector.shape_cast %129 : vector<1x16x16xf32> to vector<16x16xf32>
    %cst_71 = arith.constant dense<0.000000e+00> : vector<16x512xf32>
    %131 = tpu.matmul %130, %128, %cst_71 {dimension_numbers = #tpu.dot_dimension_numbers<[1], [0], [0], [1], [0, 0, 1, 1], [], []>} : vector<16x16xf32>, vector<16x512xf32>, vector<16x512xf32> -> vector<16x512xf32>
    %132 = arith.addf %124, %131 : vector<16x512xf32>
    %c495_i32_72 = arith.constant 495 : i32
    %133 = tpu.dynamic_rotate %73 by %c495_i32_72 dim 1 : vector<16x512xf32>, i32 -> vector<16x512xf32>
    %134 = vector.extract_strided_slice %1 {offsets = [7, 0], sizes = [1, 512], strides = [1, 1]} : vector<8x512xf32> to vector<1x512xf32>
    %135 = vector.broadcast %134 : vector<1x512xf32> to vector<16x512xf32>
    %136 = arith.mulf %133, %135 : vector<16x512xf32>
    %c8_73 = arith.constant 8 : index
    %c0_74 = arith.constant 0 : index
    %c0_75 = arith.constant 0 : index
    %137 = vector.load %arg5[%c8_73, %c0_74, %c0_75] : memref<9x16x16xf32, #tpu.memory_space<vmem>>, vector<1x16x16xf32>
    %138 = vector.shape_cast %137 : vector<1x16x16xf32> to vector<16x16xf32>
    %cst_76 = arith.constant dense<0.000000e+00> : vector<16x512xf32>
    %139 = tpu.matmul %138, %136, %cst_76 {dimension_numbers = #tpu.dot_dimension_numbers<[1], [0], [0], [1], [0, 0, 1, 1], [], []>} : vector<16x16xf32>, vector<16x512xf32>, vector<16x512xf32> -> vector<16x512xf32>
    %140 = arith.addf %132, %139 : vector<16x512xf32>
    %c0_77 = arith.constant 0 : index
    %c0_78 = arith.constant 0 : index
    %141 = vector.load %arg6[%c0_77, %c0_78] : memref<16x1xf32, #tpu.memory_space<vmem>>, vector<16x1xf32>
    %142 = vector.broadcast %141 : vector<16x1xf32> to vector<16x512xf32>
    %143 = arith.addf %140, %142 : vector<16x512xf32>
    %cst_79 = arith.constant 0.000000e+00 : f32
    %144 = vector.broadcast %cst_79 : f32 to vector<16x512xf32>
    %145 = arith.maximumf %143, %144 : vector<16x512xf32>
    %146 = arith.addf %0, %145 : vector<16x512xf32>
    %c0_80 = arith.constant 0 : index
    %c0_81 = arith.constant 0 : index
    %147 = vector.load %arg7[%c0_80, %c0_81] : memref<16x512xf32, #tpu.memory_space<vmem>>, vector<16x512xf32>
    tpu.vector_store %arg7[%c0_80, %c0_81], %146 {strides = array<i32>} : memref<16x512xf32, #tpu.memory_space<vmem>>, vector<16x512xf32>,
    return
  }
  func.func @transform_0(%arg0: i32) -> (i32, i32) {
    %c0_i32 = arith.constant 0 : i32
    %c0_i32_0 = arith.constant 0 : i32
    return %c0_i32, %arg0 : i32, i32
  }
  func.func @transform_1(%arg0: i32) -> (i32, i32) {
    %c0_i32 = arith.constant 0 : i32
    %c0_i32_0 = arith.constant 0 : i32
    %c0_i32_1 = arith.constant 0 : i32
    return %c0_i32, %c0_i32_0 : i32, i32
  }
  func.func @transform_2(%arg0: i32) -> (i32, i32, i32) {
    %c0_i32 = arith.constant 0 : i32
    %c0_i32_0 = arith.constant 0 : i32
    %c0_i32_1 = arith.constant 0 : i32
    %c0_i32_2 = arith.constant 0 : i32
    return %c0_i32, %c0_i32_0, %c0_i32_1 : i32, i32, i32
  }
  func.func @transform_3(%arg0: i32) -> (i32, i32) {
    %c0_i32 = arith.constant 0 : i32
    %c0_i32_0 = arith.constant 0 : i32
    %c0_i32_1 = arith.constant 0 : i32
    return %c0_i32, %c0_i32_0 : i32, i32
  }
  func.func @transform_4(%arg0: i32) -> (i32, i32, i32) {
    %c0_i32 = arith.constant 0 : i32
    %c0_i32_0 = arith.constant 0 : i32
    %c0_i32_1 = arith.constant 0 : i32
    %c0_i32_2 = arith.constant 0 : i32
    return %c0_i32, %c0_i32_0, %c0_i32_1 : i32, i32, i32
  }
  func.func @transform_5(%arg0: i32) -> (i32, i32) {
    %c0_i32 = arith.constant 0 : i32
    %c0_i32_0 = arith.constant 0 : i32
    %c0_i32_1 = arith.constant 0 : i32
    return %c0_i32, %c0_i32_0 : i32, i32
  }
  func.func @transform_6(%arg0: i32) -> (i32, i32) {
    %c0_i32 = arith.constant 0 : i32
    %c0_i32_0 = arith.constant 0 : i32
    return %c0_i32, %arg0 : i32, i32
  }
}

</mosaic_0001>

<llo_original>
// kernel: tpu_custom_call.1
$region0: #{tpu_custom_call.1}
  #allocation0 [shape = 'u32[]', space=smem, size = 0x4, offset = 0x4, fixed_abs, tag = 'smem constant byte address 0x4 - core index']
  #allocation1 [shape = 'u32[72,128]{1,0:T(1,128)}', space=vmem, size = 0x9000, scoped, tag = 'internal scratch']
  %s0 = inlined_call_operand.hbm [shape: f32[16,512], index: 0, kind: input, shape index: {}]
  %s1 = inlined_call_operand.vmem [shape: f32[8,512], index: 1, kind: input, shape index: {}]
  %s2 = inlined_call_operand.hbm [shape: f32[9,16,16], index: 2, kind: input, shape index: {}]
  %s3 = inlined_call_operand.vmem [shape: f32[16,1], index: 3, kind: input, shape index: {}]
  %s4 = inlined_call_operand.hbm [shape: f32[9,16,16], index: 4, kind: input, shape index: {}]
  %s5 = inlined_call_operand.vmem [shape: f32[16,1], index: 5, kind: input, shape index: {}]
  %s6 = inlined_call_operand.hbm [shape: f32[16,512], index: 6, kind: output, shape index: {}]
  %s7 = sld [smem:[#allocation0]]
  $region46: #{tpu_custom_call.1} parent=0
    _
  %s9 = ssub.s32 1, %s7
  %s10 = scalar_select 0, %s9, %s7
  $region1: #{tpu_custom_call.1} parent=0
    #allocation2 [shape = 'u8[32768]{0}', space=vmem, size = 0x8000, scoped, tag = 'input window, operand 0, single buffered']
    #allocation3 [shape = 's32[1]{0}', space=sflag, size = 0x4, scoped, tag = 'scoped memory for tpu_custom_call.1']
    #allocation4 [shape = 's32[1]{0}', space=sflag, size = 0x4, scoped, tag = 'scoped memory for tpu_custom_call.1']
    #allocation5 [shape = 'u8[73728]{0}', space=vmem, size = 0x12000, scoped, tag = 'input window, operand 2, single buffered']
    #allocation6 [shape = 's32[1]{0}', space=sflag, size = 0x4, scoped, tag = 'scoped memory for tpu_custom_call.1']
    #allocation7 [shape = 'u8[73728]{0}', space=vmem, size = 0x12000, scoped, tag = 'input window, operand 4, single buffered']
    #allocation8 [shape = 'u8[32768]{0}', space=vmem, size = 0x8000, scoped, tag = 'output window, operand 0, single buffered']
    %11 = vsyncpa [#allocation3], 0
    %12 = vsyncpa [#allocation6], 0
    %13 = vsyncpa [#allocation4], 0
    // Predicated region
    $region2: #{tpu_custom_call.1} parent=1 // pred_check
      _
    $region3: #{tpu_custom_call.1} parent=1 // pred_check_branch
      %15 = sbr.rel (0) target = $region5
    $region4: #{tpu_custom_call.1} parent=1 // pred_region
      %17 = vsyncadd [#allocation3], 0
      %s18 = sshll.u32 %s0, 4
      %s19 = int_to_ptr.hbm [resolvable:$true] %s18
      %s20 = sshll.u32 [#allocation2], 4
      %s21 = int_to_ptr.vmem [resolvable:$true] %s20
      %26 = dma.hbm_to_vmem [thread:$0]  %s19, 1024, %s21, [#allocation3], 512, 512, 32
    $region5: #{tpu_custom_call.1} parent=1 // pred_fallthru
      _
    // Predicated region
    $region6: #{tpu_custom_call.1} parent=1 // pred_check
      _
    $region7: #{tpu_custom_call.1} parent=1 // pred_check_branch
      %28 = sbr.rel (0) target = $region9
    $region8: #{tpu_custom_call.1} parent=1 // pred_region
      _
    $region9: #{tpu_custom_call.1} parent=1 // pred_fallthru
      _
    // Predicated region
    $region10: #{tpu_custom_call.1} parent=1 // pred_check
      _
    $region11: #{tpu_custom_call.1} parent=1 // pred_check_branch
      %30 = sbr.rel (0) target = $region13
    $region12: #{tpu_custom_call.1} parent=1 // pred_region
      %32 = vsyncadd [#allocation6], 0
      %s33 = sshll.u32 %s2, 4
      %s34 = int_to_ptr.hbm [resolvable:$true] %s33
      %s35 = sshll.u32 [#allocation5], 4
      %s36 = int_to_ptr.vmem [resolvable:$true] %s35
      %41 = dma.hbm_to_vmem [thread:$0]  %s34, 2304, %s36, [#allocation6], 128, 128, 8
    $region13: #{tpu_custom_call.1} parent=1 // pred_fallthru
      _
    // Predicated region
    $region14: #{tpu_custom_call.1} parent=1 // pred_check
      _
    $region15: #{tpu_custom_call.1} parent=1 // pred_check_branch
      %43 = sbr.rel (0) target = $region17
    $region16: #{tpu_custom_call.1} parent=1 // pred_region
      _
    $region17: #{tpu_custom_call.1} parent=1 // pred_fallthru
      _
    // Predicated region
    $region18: #{tpu_custom_call.1} parent=1 // pred_check
      _
    $region19: #{tpu_custom_call.1} parent=1 // pred_check_branch
      %45 = sbr.rel (0) target = $region21
    $region20: #{tpu_custom_call.1} parent=1 // pred_region
      %47 = vsyncadd [#allocation6], 0
      %s48 = sshll.u32 %s4, 4
      %s49 = int_to_ptr.hbm [resolvable:$true] %s48
      %s50 = sshll.u32 [#allocation7], 4
      %s51 = int_to_ptr.vmem [resolvable:$true] %s50
      %56 = dma.hbm_to_vmem [thread:$0]  %s49, 2304, %s51, [#allocation6], 128, 128, 8
    $region21: #{tpu_custom_call.1} parent=1 // pred_fallthru
      _
    // Predicated region
    $region22: #{tpu_custom_call.1} parent=1 // pred_check
      _
    $region23: #{tpu_custom_call.1} parent=1 // pred_check_branch
      %58 = sbr.rel (0) target = $region25
    $region24: #{tpu_custom_call.1} parent=1 // pred_region
      _
    $region25: #{tpu_custom_call.1} parent=1 // pred_fallthru
      _
    // Predicated region
    $region26: #{tpu_custom_call.1} parent=1 // pred_check
      _
    $region27: #{tpu_custom_call.1} parent=1 // pred_check_branch
      %60 = sbr.rel (0) target = $region29
    $region28: #{tpu_custom_call.1} parent=1 // pred_region
      %62 = dma.done [#allocation3], 1024
    $region29: #{tpu_custom_call.1} parent=1 // pred_fallthru
      _
    // Predicated region
    $region30: #{tpu_custom_call.1} parent=1 // pred_check
      _
    $region31: #{tpu_custom_call.1} parent=1 // pred_check_branch
      %64 = sbr.rel (0) target = $region33
    $region32: #{tpu_custom_call.1} parent=1 // pred_region
      %66 = dma.done [#allocation6], 2304
    $region33: #{tpu_custom_call.1} parent=1 // pred_fallthru
      _
    // Predicated region
    $region34: #{tpu_custom_call.1} parent=1 // pred_check
      _
    $region35: #{tpu_custom_call.1} parent=1 // pred_check_branch
      %68 = sbr.rel (0) target = $region37
    $region36: #{tpu_custom_call.1} parent=1 // pred_region
      %70 = dma.done [#allocation6], 2304
    $region37: #{tpu_custom_call.1} parent=1 // pred_fallthru
      _
    %v71 = vld [vmem:[#allocation2] sm:$0xff]
    %v72 = vld [vmem:[#allocation2 + $0x8] sm:$0xff]
    %v73 = vld [vmem:[#allocation2 + $0x10] sm:$0xff]
    %v74 = vld [vmem:[#allocation2 + $0x18] sm:$0xff]
    %v75 = vld [vmem:[#allocation2 + $0x20] sm:$0xff]
    %v76 = vld [vmem:[#allocation2 + $0x28] sm:$0xff]
    %v77 = vld [vmem:[#allocation2 + $0x30] sm:$0xff]
    %v78 = vld [vmem:[#allocation2 + $0x38] sm:$0xff]
    %v79 = vld [vmem:[%s1] sm:$0xff]
    %v80 = vld [vmem:[%s1 + $0x8] sm:$0xff]
    %v81 = vld [vmem:[%s1 + $0x10] sm:$0xff]
    %v82 = vld [vmem:[%s1 + $0x18] sm:$0xff]
    %s83 = scalar_lea.vmem [#allocation5], 64
    %v84 = vld [vmem:[%s83] sm:$0xff]
    %v85 = vld [vmem:[%s83 + $0x8] sm:$0xff]
    %86 = vrot.lane.b32.xlu0 %v71, 17
    %v87 = vpop.permute.xlu0 %86
    %88 = vrot.lane.b32.xlu0 %v75, 17
    %v89 = vpop.permute.xlu0 %88
    %90 = vrot.lane.b32.xlu0 %v72, 17
    %v91 = vpop.permute.xlu0 %90
    %92 = vrot.lane.b32.xlu0 %v76, 17
    %v93 = vpop.permute.xlu0 %92
    %94 = vrot.lane.b32.xlu0 %v73, 17
    %v95 = vpop.permute.xlu0 %94
    %96 = vrot.lane.b32.xlu0 %v77, 17
    %v97 = vpop.permute.xlu0 %96
    %98 = vrot.lane.b32.xlu0 %v74, 17
    %v99 = vpop.permute.xlu0 %98
    %100 = vrot.lane.b32.xlu0 %v78, 17
    %v101 = vpop.permute.xlu0 %100
    %v102 = vlaneseq
    %v103 = vand.u32 %v102, 127
    %vm104 = vcmp.lt.s32.totalorder %v103, 17
    %v105 = vsel %vm104, %v95, %v99
    %v106 = vsel %vm104, %v97, %v101
    %v107 = vsel %vm104, %v91, %v95
    %v108 = vsel %vm104, %v93, %v97
    %v109 = vsel %vm104, %v87, %v91
    %v110 = vsel %vm104, %v89, %v93
    %v111 = vsel %vm104, %v99, %v87
    %v112 = vsel %vm104, %v101, %v89
    %v113 = vperm.slane %v79, 0
    %v114 = vperm.slane %v80, 0
    %v115 = vperm.slane %v81, 0
    %v116 = vperm.slane %v82, 0
    %v117 = vmul.f32 %v111, %v113
    %v118 = vmul.f32 %v109, %v114
    %v119 = vmul.f32 %v107, %v115
    %v120 = vmul.f32 %v105, %v116
    %v121 = vmul.f32 %v112, %v113
    %v122 = vmul.f32 %v110, %v114
    %v123 = vmul.f32 %v108, %v115
    %v124 = vmul.f32 %v106, %v116
    %v125 = vld [vmem:[#allocation5] sm:$0xff]
    %v126 = vld [vmem:[#allocation5 + $0x8] sm:$0xff]
    %vm127 = vcmask 130048
    %v129 = vsel %vm127, %v125, 0
    %v132 = vsel %vm127, %v126, 0
    %134 = vmatpush.msra.mxu0 0.0
    %135 = vmatpush.msra.mxu0 0.0
    %136 = vmatpush.msra.mxu0 0.0
    %137 = vmatpush.msra.mxu0 0.0
    %138 = vmatpush.msra.mxu0 0.0
    %139 = vmatpush.msra.mxu0 0.0
    %140 = vmatpush.msra.mxu0 0.0
    %141 = vmatpush.msra.mxu0 0.0
    %142 = vmatpush.msra.mxu0 0.0
    %143 = vmatpush.msra.mxu0 0.0
    %144 = vmatpush.msra.mxu0 0.0
    %145 = vmatpush.msra.mxu0 0.0
    %146 = vmatpush.msra.mxu0 0.0
    %147 = vmatpush.msra.mxu0 0.0
    %148 = vmatpush.msra.mxu0 %v121
    %149 = vmatpush.msra.mxu0 %v117
    %150 = vmatmul.f32.gmra.mxu0 %v129
    %v151 = vpop.f32.mrf.mxu0
    %v152 = vadd.f32 0.0, %v151
    %153 = vmatmul.f32.gmra.mxu0 %v132
    %v154 = vpop.f32.mrf.mxu0
    %v155 = vadd.f32 0.0, %v154
    %156 = vdwg.mxu0
    %157 = vmatpush.msra.mxu0 0.0
    %158 = vmatpush.msra.mxu0 0.0
    %159 = vmatpush.msra.mxu0 0.0
    %160 = vmatpush.msra.mxu0 0.0
    %161 = vmatpush.msra.mxu0 0.0
    %162 = vmatpush.msra.mxu0 0.0
    %163 = vmatpush.msra.mxu0 0.0
    %164 = vmatpush.msra.mxu0 0.0
    %165 = vmatpush.msra.mxu0 0.0
    %166 = vmatpush.msra.mxu0 0.0
    %167 = vmatpush.msra.mxu0 0.0
    %168 = vmatpush.msra.mxu0 0.0
    %169 = vmatpush.msra.mxu0 0.0
    %170 = vmatpush.msra.mxu0 0.0
    %171 = vmatpush.msra.mxu0 %v122
    %172 = vmatpush.msra.mxu0 %v118
    %173 = vmatmul.f32.gmra.mxu0 %v129
    %v174 = vpop.f32.mrf.mxu0
    %v175 = vadd.f32 0.0, %v174
    %176 = vmatmul.f32.gmra.mxu0 %v132
    %v177 = vpop.f32.mrf.mxu0
    %v178 = vadd.f32 0.0, %v177
    %179 = vdwg.mxu0
    %180 = vmatpush.msra.mxu0 0.0
    %181 = vmatpush.msra.mxu0 0.0
    %182 = vmatpush.msra.mxu0 0.0
    %183 = vmatpush.msra.mxu0 0.0
    %184 = vmatpush.msra.mxu0 0.0
    %185 = vmatpush.msra.mxu0 0.0
    %186 = vmatpush.msra.mxu0 0.0
    %187 = vmatpush.msra.mxu0 0.0
    %188 = vmatpush.msra.mxu0 0.0
    %189 = vmatpush.msra.mxu0 0.0
    %190 = vmatpush.msra.mxu0 0.0
    %191 = vmatpush.msra.mxu0 0.0
    %192 = vmatpush.msra.mxu0 0.0
    %193 = vmatpush.msra.mxu0 0.0
    %194 = vmatpush.msra.mxu0 %v123
    %195 = vmatpush.msra.mxu0 %v119
    %196 = vmatmul.f32.gmra.mxu0 %v129
    %v197 = vpop.f32.mrf.mxu0
    %v198 = vadd.f32 0.0, %v197
    %199 = vmatmul.f32.gmra.mxu0 %v132
    %v200 = vpop.f32.mrf.mxu0
    %v201 = vadd.f32 0.0, %v200
    %202 = vdwg.mxu0
    %203 = vmatpush.msra.mxu0 0.0
    %204 = vmatpush.msra.mxu0 0.0
    %205 = vmatpush.msra.mxu0 0.0
    %206 = vmatpush.msra.mxu0 0.0
    %207 = vmatpush.msra.mxu0 0.0
    %208 = vmatpush.msra.mxu0 0.0
    %209 = vmatpush.msra.mxu0 0.0
    %210 = vmatpush.msra.mxu0 0.0
    %211 = vmatpush.msra.mxu0 0.0
    %212 = vmatpush.msra.mxu0 0.0
    %213 = vmatpush.msra.mxu0 0.0
    %214 = vmatpush.msra.mxu0 0.0
    %215 = vmatpush.msra.mxu0 0.0
    %216 = vmatpush.msra.mxu0 0.0
    %217 = vmatpush.msra.mxu0 %v124
    %218 = vmatpush.msra.mxu0 %v120
    %219 = vmatmul.f32.gmra.mxu0 %v129
    %v220 = vpop.f32.mrf.mxu0
    %v221 = vadd.f32 0.0, %v220
    %222 = vmatmul.f32.gmra.mxu0 %v132
    %v223 = vpop.f32.mrf.mxu0
    %v224 = vadd.f32 0.0, %v223
    %225 = vdwg.mxu0
    %v227 = vsel %vm127, %v84, 0
    %v230 = vsel %vm127, %v85, 0
    %232 = vmatpush.msra.mxu0 0.0
    %233 = vmatpush.msra.mxu0 0.0
    %234 = vmatpush.msra.mxu0 0.0
    %235 = vmatpush.msra.mxu0 0.0
    %236 = vmatpush.msra.mxu0 0.0
    %237 = vmatpush.msra.mxu0 0.0
    %238 = vmatpush.msra.mxu0 0.0
    %239 = vmatpush.msra.mxu0 0.0
    %240 = vmatpush.msra.mxu0 0.0
    %241 = vmatpush.msra.mxu0 0.0
    %242 = vmatpush.msra.mxu0 0.0
    %243 = vmatpush.msra.mxu0 0.0
    %244 = vmatpush.msra.mxu0 0.0
    %245 = vmatpush.msra.mxu0 0.0
    %246 = vmatpush.msra.mxu0 %v75
    %247 = vmatpush.msra.mxu0 %v71
    %248 = vmatmul.f32.gmra.mxu0 %v227
    %v249 = vpop.f32.mrf.mxu0
    %v250 = vadd.f32 %v152, %v249
    %251 = vmatmul.f32.gmra.mxu0 %v230
    %v252 = vpop.f32.mrf.mxu0
    %v253 = vadd.f32 %v155, %v252
    %254 = vdwg.mxu0
    %255 = vmatpush.msra.mxu0 0.0
    %256 = vmatpush.msra.mxu0 0.0
    %257 = vmatpush.msra.mxu0 0.0
    %258 = vmatpush.msra.mxu0 0.0
    %259 = vmatpush.msra.mxu0 0.0
    %260 = vmatpush.msra.mxu0 0.0
    %261 = vmatpush.msra.mxu0 0.0
    %262 = vmatpush.msra.mxu0 0.0
    %263 = vmatpush.msra.mxu0 0.0
    %264 = vmatpush.msra.mxu0 0.0
    %265 = vmatpush.msra.mxu0 0.0
    %266 = vmatpush.msra.mxu0 0.0
    %267 = vmatpush.msra.mxu0 0.0
    %268 = vmatpush.msra.mxu0 0.0
    %269 = vmatpush.msra.mxu0 %v76
    %270 = vmatpush.msra.mxu0 %v72
    %271 = vmatmul.f32.gmra.mxu0 %v227
    %v272 = vpop.f32.mrf.mxu0
    %v273 = vadd.f32 %v175, %v272
    %274 = vmatmul.f32.gmra.mxu0 %v230
    %v275 = vpop.f32.mrf.mxu0
    %v276 = vadd.f32 %v178, %v275
    %277 = vdwg.mxu0
    %278 = vmatpush.msra.mxu0 0.0
    %279 = vmatpush.msra.mxu0 0.0
    %280 = vmatpush.msra.mxu0 0.0
    %281 = vmatpush.msra.mxu0 0.0
    %282 = vmatpush.msra.mxu0 0.0
    %283 = vmatpush.msra.mxu0 0.0
    %284 = vmatpush.msra.mxu0 0.0
    %285 = vmatpush.msra.mxu0 0.0
    %286 = vmatpush.msra.mxu0 0.0
    %287 = vmatpush.msra.mxu0 0.0
    %288 = vmatpush.msra.mxu0 0.0
    %289 = vmatpush.msra.mxu0 0.0
    %290 = vmatpush.msra.mxu0 0.0
    %291 = vmatpush.msra.mxu0 0.0
    %292 = vmatpush.msra.mxu0 %v77
    %293 = vmatpush.msra.mxu0 %v73
    %294 = vmatmul.f32.gmra.mxu0 %v227
    %v295 = vpop.f32.mrf.mxu0
    %v296 = vadd.f32 %v198, %v295
    %297 = vmatmul.f32.gmra.mxu0 %v230
    %v298 = vpop.f32.mrf.mxu0
    %v299 = vadd.f32 %v201, %v298
    %300 = vdwg.mxu0
    %301 = vmatpush.msra.mxu0 0.0
    %302 = vmatpush.msra.mxu0 0.0
    %303 = vmatpush.msra.mxu0 0.0
    %304 = vmatpush.msra.mxu0 0.0
    %305 = vmatpush.msra.mxu0 0.0
    %306 = vmatpush.msra.mxu0 0.0
    %307 = vmatpush.msra.mxu0 0.0
    %308 = vmatpush.msra.mxu0 0.0
    %309 = vmatpush.msra.mxu0 0.0
    %310 = vmatpush.msra.mxu0 0.0
    %311 = vmatpush.msra.mxu0 0.0
    %312 = vmatpush.msra.mxu0 0.0
    %313 = vmatpush.msra.mxu0 0.0
    %314 = vmatpush.msra.mxu0 0.0
    %315 = vmatpush.msra.mxu0 %v78
    %316 = vmatpush.msra.mxu0 %v74
    %317 = vmatmul.f32.gmra.mxu0 %v227
    %v318 = vpop.f32.mrf.mxu0
    %v319 = vadd.f32 %v221, %v318
    %320 = vmatmul.f32.gmra.mxu0 %v230
    %v321 = vpop.f32.mrf.mxu0
    %v322 = vadd.f32 %v224, %v321
    %323 = vdwg.mxu0
    %324 = vrot.lane.b32.xlu0 %v71, 16
    %v325 = vpop.permute.xlu0 %324
    %326 = vrot.lane.b32.xlu0 %v75, 16
    %v327 = vpop.permute.xlu0 %326
    %328 = vrot.lane.b32.xlu0 %v72, 16
    %v329 = vpop.permute.xlu0 %328
    %330 = vrot.lane.b32.xlu0 %v76, 16
    %v331 = vpop.permute.xlu0 %330
    %332 = vrot.lane.b32.xlu0 %v73, 16
    %v333 = vpop.permute.xlu0 %332
    %334 = vrot.lane.b32.xlu0 %v77, 16
    %v335 = vpop.permute.xlu0 %334
    %336 = vrot.lane.b32.xlu0 %v74, 16
    %v337 = vpop.permute.xlu0 %336
    %338 = vrot.lane.b32.xlu0 %v78, 16
    %v339 = vpop.permute.xlu0 %338
    %vm340 = vcmp.lt.s32.totalorder %v103, 16
    %v341 = vsel %vm340, %v333, %v337
    %v342 = vsel %vm340, %v335, %v339
    %v343 = vsel %vm340, %v329, %v333
    %v344 = vsel %vm340, %v331, %v335
    %v345 = vsel %vm340, %v325, %v329
    %v346 = vsel %vm340, %v327, %v331
    %v347 = vsel %vm340, %v337, %v325
    %v348 = vsel %vm340, %v339, %v327
    %v349 = vperm.slane %v79, 1
    %v350 = vperm.slane %v80, 1
    %v351 = vperm.slane %v81, 1
    %v352 = vperm.slane %v82, 1
    %v353 = vmul.f32 %v347, %v349
    %v354 = vmul.f32 %v345, %v350
    %v355 = vmul.f32 %v343, %v351
    %v356 = vmul.f32 %v341, %v352
    %v357 = vmul.f32 %v348, %v349
    %v358 = vmul.f32 %v346, %v350
    %v359 = vmul.f32 %v344, %v351
    %v360 = vmul.f32 %v342, %v352
    %s361 = scalar_lea.vmem [#allocation5], 16
    %v362 = vld [vmem:[%s361] sm:$0xff]
    %v363 = vld [vmem:[%s361 + $0x8] sm:$0xff]
    %v365 = vsel %vm127, %v362, 0
    %v368 = vsel %vm127, %v363, 0
    %370 = vmatpush.msra.mxu0 0.0
    %371 = vmatpush.msra.mxu0 0.0
    %372 = vmatpush.msra.mxu0 0.0
    %373 = vmatpush.msra.mxu0 0.0
    %374 = vmatpush.msra.mxu0 0.0
    %375 = vmatpush.msra.mxu0 0.0
    %376 = vmatpush.msra.mxu0 0.0
    %377 = vmatpush.msra.mxu0 0.0
    %378 = vmatpush.msra.mxu0 0.0
    %379 = vmatpush.msra.mxu0 0.0
    %380 = vmatpush.msra.mxu0 0.0
    %381 = vmatpush.msra.mxu0 0.0
    %382 = vmatpush.msra.mxu0 0.0
    %383 = vmatpush.msra.mxu0 0.0
    %384 = vmatpush.msra.mxu0 %v357
    %385 = vmatpush.msra.mxu0 %v353
    %386 = vmatmul.f32.gmra.mxu0 %v365
    %v387 = vpop.f32.mrf.mxu0
    %v388 = vadd.f32 0.0, %v387
    %389 = vmatmul.f32.gmra.mxu0 %v368
    %v390 = vpop.f32.mrf.mxu0
    %v391 = vadd.f32 0.0, %v390
    %392 = vdwg.mxu0
    %393 = vmatpush.msra.mxu0 0.0
    %394 = vmatpush.msra.mxu0 0.0
    %395 = vmatpush.msra.mxu0 0.0
    %396 = vmatpush.msra.mxu0 0.0
    %397 = vmatpush.msra.mxu0 0.0
    %398 = vmatpush.msra.mxu0 0.0
    %399 = vmatpush.msra.mxu0 0.0
    %400 = vmatpush.msra.mxu0 0.0
    %401 = vmatpush.msra.mxu0 0.0
    %402 = vmatpush.msra.mxu0 0.0
    %403 = vmatpush.msra.mxu0 0.0
    %404 = vmatpush.msra.mxu0 0.0
    %405 = vmatpush.msra.mxu0 0.0
    %406 = vmatpush.msra.mxu0 0.0
    %407 = vmatpush.msra.mxu0 %v358
    %408 = vmatpush.msra.mxu0 %v354
    %409 = vmatmul.f32.gmra.mxu0 %v365
    %v410 = vpop.f32.mrf.mxu0
    %v411 = vadd.f32 0.0, %v410
    %412 = vmatmul.f32.gmra.mxu0 %v368
    %v413 = vpop.f32.mrf.mxu0
    %v414 = vadd.f32 0.0, %v413
    %415 = vdwg.mxu0
    %416 = vmatpush.msra.mxu0 0.0
    %417 = vmatpush.msra.mxu0 0.0
    %418 = vmatpush.msra.mxu0 0.0
    %419 = vmatpush.msra.mxu0 0.0
    %420 = vmatpush.msra.mxu0 0.0
    %421 = vmatpush.msra.mxu0 0.0
    %422 = vmatpush.msra.mxu0 0.0
    %423 = vmatpush.msra.mxu0 0.0
    %424 = vmatpush.msra.mxu0 0.0
    %425 = vmatpush.msra.mxu0 0.0
    %426 = vmatpush.msra.mxu0 0.0
    %427 = vmatpush.msra.mxu0 0.0
    %428 = vmatpush.msra.mxu0 0.0
    %429 = vmatpush.msra.mxu0 0.0
    %430 = vmatpush.msra.mxu0 %v359
    %431 = vmatpush.msra.mxu0 %v355
    %432 = vmatmul.f32.gmra.mxu0 %v365
    %v433 = vpop.f32.mrf.mxu0
    %v434 = vadd.f32 0.0, %v433
    %435 = vmatmul.f32.gmra.mxu0 %v368
    %v436 = vpop.f32.mrf.mxu0
    %v437 = vadd.f32 0.0, %v436
    %438 = vdwg.mxu0
    %439 = vmatpush.msra.mxu0 0.0
    %440 = vmatpush.msra.mxu0 0.0
    %441 = vmatpush.msra.mxu0 0.0
    %442 = vmatpush.msra.mxu0 0.0
    %443 = vmatpush.msra.mxu0 0.0
    %444 = vmatpush.msra.mxu0 0.0
    %445 = vmatpush.msra.mxu0 0.0
    %446 = vmatpush.msra.mxu0 0.0
    %447 = vmatpush.msra.mxu0 0.0
    %448 = vmatpush.msra.mxu0 0.0
    %449 = vmatpush.msra.mxu0 0.0
    %450 = vmatpush.msra.mxu0 0.0
    %451 = vmatpush.msra.mxu0 0.0
    %452 = vmatpush.msra.mxu0 0.0
    %453 = vmatpush.msra.mxu0 %v360
    %454 = vmatpush.msra.mxu0 %v356
    %455 = vmatmul.f32.gmra.mxu0 %v365
    %v456 = vpop.f32.mrf.mxu0
    %v457 = vadd.f32 0.0, %v456
    %458 = vmatmul.f32.gmra.mxu0 %v368
    %v459 = vpop.f32.mrf.mxu0
    %v460 = vadd.f32 0.0, %v459
    %461 = vdwg.mxu0
    %v462 = vadd.f32 %v250, %v388
    %v463 = vadd.f32 %v273, %v411
    %v464 = vadd.f32 %v296, %v434
    %v465 = vadd.f32 %v319, %v457
    %v466 = vadd.f32 %v253, %v391
    %v467 = vadd.f32 %v276, %v414
    %v468 = vadd.f32 %v299, %v437
    %v469 = vadd.f32 %v322, %v460
    %470 = vrot.lane.b32.xlu0 %v71, 15
    %v471 = vpop.permute.xlu0 %470
    %472 = vrot.lane.b32.xlu0 %v75, 15
    %v473 = vpop.permute.xlu0 %472
    %474 = vrot.lane.b32.xlu0 %v72, 15
    %v475 = vpop.permute.xlu0 %474
    %476 = vrot.lane.b32.xlu0 %v76, 15
    %v477 = vpop.permute.xlu0 %476
    %478 = vrot.lane.b32.xlu0 %v73, 15
    %v479 = vpop.permute.xlu0 %478
    %480 = vrot.lane.b32.xlu0 %v77, 15
    %v481 = vpop.permute.xlu0 %480
    %482 = vrot.lane.b32.xlu0 %v74, 15
    %v483 = vpop.permute.xlu0 %482
    %484 = vrot.lane.b32.xlu0 %v78, 15
    %v485 = vpop.permute.xlu0 %484
    %vm486 = vcmp.lt.s32.totalorder %v103, 15
    %v487 = vsel %vm486, %v479, %v483
    %v488 = vsel %vm486, %v481, %v485
    %v489 = vsel %vm486, %v475, %v479
    %v490 = vsel %vm486, %v477, %v481
    %v491 = vsel %vm486, %v471, %v475
    %v492 = vsel %vm486, %v473, %v477
    %v493 = vsel %vm486, %v483, %v471
    %v494 = vsel %vm486, %v485, %v473
    %v495 = vperm.slane %v79, 2
    %v496 = vperm.slane %v80, 2
    %v497 = vperm.slane %v81, 2
    %v498 = vperm.slane %v82, 2
    %v499 = vmul.f32 %v493, %v495
    %v500 = vmul.f32 %v491, %v496
    %v501 = vmul.f32 %v489, %v497
    %v502 = vmul.f32 %v487, %v498
    %v503 = vmul.f32 %v494, %v495
    %v504 = vmul.f32 %v492, %v496
    %v505 = vmul.f32 %v490, %v497
    %v506 = vmul.f32 %v488, %v498
    %s507 = scalar_lea.vmem [#allocation5], 32
    %v508 = vld [vmem:[%s507] sm:$0xff]
    %v509 = vld [vmem:[%s507 + $0x8] sm:$0xff]
    %v511 = vsel %vm127, %v508, 0
    %v514 = vsel %vm127, %v509, 0
    %516 = vmatpush.msra.mxu0 0.0
    %517 = vmatpush.msra.mxu0 0.0
    %518 = vmatpush.msra.mxu0 0.0
    %519 = vmatpush.msra.mxu0 0.0
    %520 = vmatpush.msra.mxu0 0.0
    %521 = vmatpush.msra.mxu0 0.0
    %522 = vmatpush.msra.mxu0 0.0
    %523 = vmatpush.msra.mxu0 0.0
    %524 = vmatpush.msra.mxu0 0.0
    %525 = vmatpush.msra.mxu0 0.0
    %526 = vmatpush.msra.mxu0 0.0
    %527 = vmatpush.msra.mxu0 0.0
    %528 = vmatpush.msra.mxu0 0.0
    %529 = vmatpush.msra.mxu0 0.0
    %530 = vmatpush.msra.mxu0 %v503
    %531 = vmatpush.msra.mxu0 %v499
    %532 = vmatmul.f32.gmra.mxu0 %v511
    %v533 = vpop.f32.mrf.mxu0
    %v534 = vadd.f32 0.0, %v533
    %535 = vmatmul.f32.gmra.mxu0 %v514
    %v536 = vpop.f32.mrf.mxu0
    %v537 = vadd.f32 0.0, %v536
    %538 = vdwg.mxu0
    %539 = vmatpush.msra.mxu0 0.0
    %540 = vmatpush.msra.mxu0 0.0
    %541 = vmatpush.msra.mxu0 0.0
    %542 = vmatpush.msra.mxu0 0.0
    %543 = vmatpush.msra.mxu0 0.0
    %544 = vmatpush.msra.mxu0 0.0
    %545 = vmatpush.msra.mxu0 0.0
    %546 = vmatpush.msra.mxu0 0.0
    %547 = vmatpush.msra.mxu0 0.0
    %548 = vmatpush.msra.mxu0 0.0
    %549 = vmatpush.msra.mxu0 0.0
    %550 = vmatpush.msra.mxu0 0.0
    %551 = vmatpush.msra.mxu0 0.0
    %552 = vmatpush.msra.mxu0 0.0
    %553 = vmatpush.msra.mxu0 %v504
    %554 = vmatpush.msra.mxu0 %v500
    %555 = vmatmul.f32.gmra.mxu0 %v511
    %v556 = vpop.f32.mrf.mxu0
    %v557 = vadd.f32 0.0, %v556
    %558 = vmatmul.f32.gmra.mxu0 %v514
    %v559 = vpop.f32.mrf.mxu0
    %v560 = vadd.f32 0.0, %v559
    %561 = vdwg.mxu0
    %562 = vmatpush.msra.mxu0 0.0
    %563 = vmatpush.msra.mxu0 0.0
    %564 = vmatpush.msra.mxu0 0.0
    %565 = vmatpush.msra.mxu0 0.0
    %566 = vmatpush.msra.mxu0 0.0
    %567 = vmatpush.msra.mxu0 0.0
    %568 = vmatpush.msra.mxu0 0.0
    %569 = vmatpush.msra.mxu0 0.0
    %570 = vmatpush.msra.mxu0 0.0
    %571 = vmatpush.msra.mxu0 0.0
    %572 = vmatpush.msra.mxu0 0.0
    %573 = vmatpush.msra.mxu0 0.0
    %574 = vmatpush.msra.mxu0 0.0
    %575 = vmatpush.msra.mxu0 0.0
    %576 = vmatpush.msra.mxu0 %v505
    %577 = vmatpush.msra.mxu0 %v501
    %578 = vmatmul.f32.gmra.mxu0 %v511
    %v579 = vpop.f32.mrf.mxu0
    %v580 = vadd.f32 0.0, %v579
    %581 = vmatmul.f32.gmra.mxu0 %v514
    %v582 = vpop.f32.mrf.mxu0
    %v583 = vadd.f32 0.0, %v582
    %584 = vdwg.mxu0
    %585 = vmatpush.msra.mxu0 0.0
    %586 = vmatpush.msra.mxu0 0.0
    %587 = vmatpush.msra.mxu0 0.0
    %588 = vmatpush.msra.mxu0 0.0
    %589 = vmatpush.msra.mxu0 0.0
    %590 = vmatpush.msra.mxu0 0.0
    %591 = vmatpush.msra.mxu0 0.0
    %592 = vmatpush.msra.mxu0 0.0
    %593 = vmatpush.msra.mxu0 0.0
    %594 = vmatpush.msra.mxu0 0.0
    %595 = vmatpush.msra.mxu0 0.0
    %596 = vmatpush.msra.mxu0 0.0
    %597 = vmatpush.msra.mxu0 0.0
    %598 = vmatpush.msra.mxu0 0.0
    %599 = vmatpush.msra.mxu0 %v506
    %600 = vmatpush.msra.mxu0 %v502
    %601 = vmatmul.f32.gmra.mxu0 %v511
    %v602 = vpop.f32.mrf.mxu0
    %v603 = vadd.f32 0.0, %v602
    %604 = vmatmul.f32.gmra.mxu0 %v514
    %v605 = vpop.f32.mrf.mxu0
    %v606 = vadd.f32 0.0, %v605
    %607 = vdwg.mxu0
    %v608 = vadd.f32 %v462, %v534
    %v609 = vadd.f32 %v463, %v557
    %v610 = vadd.f32 %v464, %v580
    %v611 = vadd.f32 %v465, %v603
    %v612 = vadd.f32 %v466, %v537
    %v613 = vadd.f32 %v467, %v560
    %v614 = vadd.f32 %v468, %v583
    %v615 = vadd.f32 %v469, %v606
    %616 = vrot.lane.b32.xlu0 %v71, 1
    %v617 = vpop.permute.xlu0 %616
    %618 = vrot.lane.b32.xlu0 %v75, 1
    %v619 = vpop.permute.xlu0 %618
    %620 = vrot.lane.b32.xlu0 %v72, 1
    %v621 = vpop.permute.xlu0 %620
    %622 = vrot.lane.b32.xlu0 %v76, 1
    %v623 = vpop.permute.xlu0 %622
    %624 = vrot.lane.b32.xlu0 %v73, 1
    %v625 = vpop.permute.xlu0 %624
    %626 = vrot.lane.b32.xlu0 %v77, 1
    %v627 = vpop.permute.xlu0 %626
    %628 = vrot.lane.b32.xlu0 %v74, 1
    %v629 = vpop.permute.xlu0 %628
    %630 = vrot.lane.b32.xlu0 %v78, 1
    %v631 = vpop.permute.xlu0 %630
    %vm632 = vcmp.lt.s32.totalorder %v103, 1
    %v633 = vsel %vm632, %v625, %v629
    %v634 = vsel %vm632, %v627, %v631
    %v635 = vsel %vm632, %v621, %v625
    %v636 = vsel %vm632, %v623, %v627
    %v637 = vsel %vm632, %v617, %v621
    %v638 = vsel %vm632, %v619, %v623
    %v639 = vsel %vm632, %v629, %v617
    %v640 = vsel %vm632, %v631, %v619
    %v641 = vperm.slane %v79, 3
    %v642 = vperm.slane %v80, 3
    %v643 = vperm.slane %v81, 3
    %v644 = vperm.slane %v82, 3
    %v645 = vmul.f32 %v639, %v641
    %v646 = vmul.f32 %v637, %v642
    %v647 = vmul.f32 %v635, %v643
    %v648 = vmul.f32 %v633, %v644
    %v649 = vmul.f32 %v640, %v641
    %v650 = vmul.f32 %v638, %v642
    %v651 = vmul.f32 %v636, %v643
    %v652 = vmul.f32 %v634, %v644
    %s653 = scalar_lea.vmem [#allocation5], 48
    %v654 = vld [vmem:[%s653] sm:$0xff]
    %v655 = vld [vmem:[%s653 + $0x8] sm:$0xff]
    %v657 = vsel %vm127, %v654, 0
    %v660 = vsel %vm127, %v655, 0
    %662 = vmatpush.msra.mxu0 0.0
    %663 = vmatpush.msra.mxu0 0.0
    %664 = vmatpush.msra.mxu0 0.0
    %665 = vmatpush.msra.mxu0 0.0
    %666 = vmatpush.msra.mxu0 0.0
    %667 = vmatpush.msra.mxu0 0.0
    %668 = vmatpush.msra.mxu0 0.0
    %669 = vmatpush.msra.mxu0 0.0
    %670 = vmatpush.msra.mxu0 0.0
    %671 = vmatpush.msra.mxu0 0.0
    %672 = vmatpush.msra.mxu0 0.0
    %673 = vmatpush.msra.mxu0 0.0
    %674 = vmatpush.msra.mxu0 0.0
    %675 = vmatpush.msra.mxu0 0.0
    %676 = vmatpush.msra.mxu0 %v649
    %677 = vmatpush.msra.mxu0 %v645
    %678 = vmatmul.f32.gmra.mxu0 %v657
    %v679 = vpop.f32.mrf.mxu0
    %v680 = vadd.f32 0.0, %v679
    %681 = vmatmul.f32.gmra.mxu0 %v660
    %v682 = vpop.f32.mrf.mxu0
    %v683 = vadd.f32 0.0, %v682
    %684 = vdwg.mxu0
    %685 = vmatpush.msra.mxu0 0.0
    %686 = vmatpush.msra.mxu0 0.0
    %687 = vmatpush.msra.mxu0 0.0
    %688 = vmatpush.msra.mxu0 0.0
    %689 = vmatpush.msra.mxu0 0.0
    %690 = vmatpush.msra.mxu0 0.0
    %691 = vmatpush.msra.mxu0 0.0
    %692 = vmatpush.msra.mxu0 0.0
    %693 = vmatpush.msra.mxu0 0.0
    %694 = vmatpush.msra.mxu0 0.0
    %695 = vmatpush.msra.mxu0 0.0
    %696 = vmatpush.msra.mxu0 0.0
    %697 = vmatpush.msra.mxu0 0.0
    %698 = vmatpush.msra.mxu0 0.0
    %699 = vmatpush.msra.mxu0 %v650
    %700 = vmatpush.msra.mxu0 %v646
    %701 = vmatmul.f32.gmra.mxu0 %v657
    %v702 = vpop.f32.mrf.mxu0
    %v703 = vadd.f32 0.0, %v702
    %704 = vmatmul.f32.gmra.mxu0 %v660
    %v705 = vpop.f32.mrf.mxu0
    %v706 = vadd.f32 0.0, %v705
    %707 = vdwg.mxu0
    %708 = vmatpush.msra.mxu0 0.0
    %709 = vmatpush.msra.mxu0 0.0
    %710 = vmatpush.msra.mxu0 0.0
    %711 = vmatpush.msra.mxu0 0.0
    %712 = vmatpush.msra.mxu0 0.0
    %713 = vmatpush.msra.mxu0 0.0
    %714 = vmatpush.msra.mxu0 0.0
    %715 = vmatpush.msra.mxu0 0.0
    %716 = vmatpush.msra.mxu0 0.0
    %717 = vmatpush.msra.mxu0 0.0
    %718 = vmatpush.msra.mxu0 0.0
    %719 = vmatpush.msra.mxu0 0.0
    %720 = vmatpush.msra.mxu0 0.0
    %721 = vmatpush.msra.mxu0 0.0
    %722 = vmatpush.msra.mxu0 %v651
    %723 = vmatpush.msra.mxu0 %v647
    %724 = vmatmul.f32.gmra.mxu0 %v657
    %v725 = vpop.f32.mrf.mxu0
    %v726 = vadd.f32 0.0, %v725
    %727 = vmatmul.f32.gmra.mxu0 %v660
    %v728 = vpop.f32.mrf.mxu0
    %v729 = vadd.f32 0.0, %v728
    %730 = vdwg.mxu0
    %731 = vmatpush.msra.mxu0 0.0
    %732 = vmatpush.msra.mxu0 0.0
    %733 = vmatpush.msra.mxu0 0.0
    %734 = vmatpush.msra.mxu0 0.0
    %735 = vmatpush.msra.mxu0 0.0
    %736 = vmatpush.msra.mxu0 0.0
    %737 = vmatpush.msra.mxu0 0.0
    %738 = vmatpush.msra.mxu0 0.0
    %739 = vmatpush.msra.mxu0 0.0
    %740 = vmatpush.msra.mxu0 0.0
    %741 = vmatpush.msra.mxu0 0.0
    %742 = vmatpush.msra.mxu0 0.0
    %743 = vmatpush.msra.mxu0 0.0
    %744 = vmatpush.msra.mxu0 0.0
    %745 = vmatpush.msra.mxu0 %v652
    %746 = vmatpush.msra.mxu0 %v648
    %747 = vmatmul.f32.gmra.mxu0 %v657
    %v748 = vpop.f32.mrf.mxu0
    %v749 = vadd.f32 0.0, %v748
    %750 = vmatmul.f32.gmra.mxu0 %v660
    %v751 = vpop.f32.mrf.mxu0
    %v752 = vadd.f32 0.0, %v751
    %753 = vdwg.mxu0
    %v754 = vadd.f32 %v608, %v680
    %v755 = vadd.f32 %v609, %v703
    %v756 = vadd.f32 %v610, %v726
    %v757 = vadd.f32 %v611, %v749
    %v758 = vadd.f32 %v612, %v683
    %v759 = vadd.f32 %v613, %v706
    %v760 = vadd.f32 %v614, %v729
    %v761 = vadd.f32 %v615, %v752
    %762 = vrot.lane.b32.xlu0 %v71, 127
    %v763 = vpop.permute.xlu0 %762
    %764 = vrot.lane.b32.xlu0 %v75, 127
    %v765 = vpop.permute.xlu0 %764
    %766 = vrot.lane.b32.xlu0 %v72, 127
    %v767 = vpop.permute.xlu0 %766
    %768 = vrot.lane.b32.xlu0 %v76, 127
    %v769 = vpop.permute.xlu0 %768
    %770 = vrot.lane.b32.xlu0 %v73, 127
    %v771 = vpop.permute.xlu0 %770
    %772 = vrot.lane.b32.xlu0 %v77, 127
    %v773 = vpop.permute.xlu0 %772
    %774 = vrot.lane.b32.xlu0 %v74, 127
    %v775 = vpop.permute.xlu0 %774
    %776 = vrot.lane.b32.xlu0 %v78, 127
    %v777 = vpop.permute.xlu0 %776
    %vm778 = vcmp.lt.s32.totalorder %v103, 127
    %v779 = vsel %vm778, %v771, %v775
    %v780 = vsel %vm778, %v773, %v777
    %v781 = vsel %vm778, %v767, %v771
    %v782 = vsel %vm778, %v769, %v773
    %v783 = vsel %vm778, %v763, %v767
    %v784 = vsel %vm778, %v765, %v769
    %v785 = vsel %vm778, %v775, %v763
    %v786 = vsel %vm778, %v777, %v765
    %v787 = vperm.slane %v79, 4
    %v788 = vperm.slane %v80, 4
    %v789 = vperm.slane %v81, 4
    %v790 = vperm.slane %v82, 4
    %v791 = vmul.f32 %v783, %v787
    %v792 = vmul.f32 %v781, %v788
    %v793 = vmul.f32 %v779, %v789
    %v794 = vmul.f32 %v785, %v790
    %v795 = vmul.f32 %v784, %v787
    %v796 = vmul.f32 %v782, %v788
    %v797 = vmul.f32 %v780, %v789
    %v798 = vmul.f32 %v786, %v790
    %s799 = scalar_lea.vmem [#allocation5], 80
    %v800 = vld [vmem:[%s799] sm:$0xff]
    %v801 = vld [vmem:[%s799 + $0x8] sm:$0xff]
    %v803 = vsel %vm127, %v800, 0
    %v806 = vsel %vm127, %v801, 0
    %808 = vmatpush.msra.mxu0 0.0
    %809 = vmatpush.msra.mxu0 0.0
    %810 = vmatpush.msra.mxu0 0.0
    %811 = vmatpush.msra.mxu0 0.0
    %812 = vmatpush.msra.mxu0 0.0
    %813 = vmatpush.msra.mxu0 0.0
    %814 = vmatpush.msra.mxu0 0.0
    %815 = vmatpush.msra.mxu0 0.0
    %816 = vmatpush.msra.mxu0 0.0
    %817 = vmatpush.msra.mxu0 0.0
    %818 = vmatpush.msra.mxu0 0.0
    %819 = vmatpush.msra.mxu0 0.0
    %820 = vmatpush.msra.mxu0 0.0
    %821 = vmatpush.msra.mxu0 0.0
    %822 = vmatpush.msra.mxu0 %v795
    %823 = vmatpush.msra.mxu0 %v791
    %824 = vmatmul.f32.gmra.mxu0 %v803
    %v825 = vpop.f32.mrf.mxu0
    %v826 = vadd.f32 0.0, %v825
    %827 = vmatmul.f32.gmra.mxu0 %v806
    %v828 = vpop.f32.mrf.mxu0
    %v829 = vadd.f32 0.0, %v828
    %830 = vdwg.mxu0
    %831 = vmatpush.msra.mxu0 0.0
    %832 = vmatpush.msra.mxu0 0.0
    %833 = vmatpush.msra.mxu0 0.0
    %834 = vmatpush.msra.mxu0 0.0
    %835 = vmatpush.msra.mxu0 0.0
    %836 = vmatpush.msra.mxu0 0.0
    %837 = vmatpush.msra.mxu0 0.0
    %838 = vmatpush.msra.mxu0 0.0
    %839 = vmatpush.msra.mxu0 0.0
    %840 = vmatpush.msra.mxu0 0.0
    %841 = vmatpush.msra.mxu0 0.0
    %842 = vmatpush.msra.mxu0 0.0
    %843 = vmatpush.msra.mxu0 0.0
    %844 = vmatpush.msra.mxu0 0.0
    %845 = vmatpush.msra.mxu0 %v796
    %846 = vmatpush.msra.mxu0 %v792
    %847 = vmatmul.f32.gmra.mxu0 %v803
    %v848 = vpop.f32.mrf.mxu0
    %v849 = vadd.f32 0.0, %v848
    %850 = vmatmul.f32.gmra.mxu0 %v806
    %v851 = vpop.f32.mrf.mxu0
    %v852 = vadd.f32 0.0, %v851
    %853 = vdwg.mxu0
    %854 = vmatpush.msra.mxu0 0.0
    %855 = vmatpush.msra.mxu0 0.0
    %856 = vmatpush.msra.mxu0 0.0
    %857 = vmatpush.msra.mxu0 0.0
    %858 = vmatpush.msra.mxu0 0.0
    %859 = vmatpush.msra.mxu0 0.0
    %860 = vmatpush.msra.mxu0 0.0
    %861 = vmatpush.msra.mxu0 0.0
    %862 = vmatpush.msra.mxu0 0.0
    %863 = vmatpush.msra.mxu0 0.0
    %864 = vmatpush.msra.mxu0 0.0
    %865 = vmatpush.msra.mxu0 0.0
    %866 = vmatpush.msra.mxu0 0.0
    %867 = vmatpush.msra.mxu0 0.0
    %868 = vmatpush.msra.mxu0 %v797
    %869 = vmatpush.msra.mxu0 %v793
    %870 = vmatmul.f32.gmra.mxu0 %v803
    %v871 = vpop.f32.mrf.mxu0
    %v872 = vadd.f32 0.0, %v871
    %873 = vmatmul.f32.gmra.mxu0 %v806
    %v874 = vpop.f32.mrf.mxu0
    %v875 = vadd.f32 0.0, %v874
    %876 = vdwg.mxu0
    %877 = vmatpush.msra.mxu0 0.0
    %878 = vmatpush.msra.mxu0 0.0
    %879 = vmatpush.msra.mxu0 0.0
    %880 = vmatpush.msra.mxu0 0.0
    %881 = vmatpush.msra.mxu0 0.0
    %882 = vmatpush.msra.mxu0 0.0
    %883 = vmatpush.msra.mxu0 0.0
    %884 = vmatpush.msra.mxu0 0.0
    %885 = vmatpush.msra.mxu0 0.0
    %886 = vmatpush.msra.mxu0 0.0
    %887 = vmatpush.msra.mxu0 0.0
    %888 = vmatpush.msra.mxu0 0.0
    %889 = vmatpush.msra.mxu0 0.0
    %890 = vmatpush.msra.mxu0 0.0
    %891 = vmatpush.msra.mxu0 %v798
    %892 = vmatpush.msra.mxu0 %v794
    %893 = vmatmul.f32.gmra.mxu0 %v803
    %v894 = vpop.f32.mrf.mxu0
    %v895 = vadd.f32 0.0, %v894
    %896 = vmatmul.f32.gmra.mxu0 %v806
    %v897 = vpop.f32.mrf.mxu0
    %v898 = vadd.f32 0.0, %v897
    %899 = vdwg.mxu0
    %v900 = vadd.f32 %v754, %v826
    %v901 = vadd.f32 %v755, %v849
    %v902 = vadd.f32 %v756, %v872
    %v903 = vadd.f32 %v757, %v895
    %v904 = vadd.f32 %v758, %v829
    %v905 = vadd.f32 %v759, %v852
    %v906 = vadd.f32 %v760, %v875
    %v907 = vadd.f32 %v761, %v898
    %908 = vrot.lane.b32.xlu0 %v71, 113
    %v909 = vpop.permute.xlu0 %908
    %910 = vrot.lane.b32.xlu0 %v75, 113
    %v911 = vpop.permute.xlu0 %910
    %912 = vrot.lane.b32.xlu0 %v72, 113
    %v913 = vpop.permute.xlu0 %912
    %914 = vrot.lane.b32.xlu0 %v76, 113
    %v915 = vpop.permute.xlu0 %914
    %916 = vrot.lane.b32.xlu0 %v73, 113
    %v917 = vpop.permute.xlu0 %916
    %918 = vrot.lane.b32.xlu0 %v77, 113
    %v919 = vpop.permute.xlu0 %918
    %920 = vrot.lane.b32.xlu0 %v74, 113
    %v921 = vpop.permute.xlu0 %920
    %922 = vrot.lane.b32.xlu0 %v78, 113
    %v923 = vpop.permute.xlu0 %922
    %vm924 = vcmp.lt.s32.totalorder %v103, 113
    %v925 = vsel %vm924, %v917, %v921
    %v926 = vsel %vm924, %v919, %v923
    %v927 = vsel %vm924, %v913, %v917
    %v928 = vsel %vm924, %v915, %v919
    %v929 = vsel %vm924, %v909, %v913
    %v930 = vsel %vm924, %v911, %v915
    %v931 = vsel %vm924, %v921, %v909
    %v932 = vsel %vm924, %v923, %v911
    %v933 = vperm.slane %v79, 5
    %v934 = vperm.slane %v80, 5
    %v935 = vperm.slane %v81, 5
    %v936 = vperm.slane %v82, 5
    %v937 = vmul.f32 %v929, %v933
    %v938 = vmul.f32 %v927, %v934
    %v939 = vmul.f32 %v925, %v935
    %v940 = vmul.f32 %v931, %v936
    %v941 = vmul.f32 %v930, %v933
    %v942 = vmul.f32 %v928, %v934
    %v943 = vmul.f32 %v926, %v935
    %v944 = vmul.f32 %v932, %v936
    %s945 = scalar_lea.vmem [#allocation5], 96
    %v946 = vld [vmem:[%s945] sm:$0xff]
    %v947 = vld [vmem:[%s945 + $0x8] sm:$0xff]
    %v949 = vsel %vm127, %v946, 0
    %v952 = vsel %vm127, %v947, 0
    %954 = vmatpush.msra.mxu0 0.0
    %955 = vmatpush.msra.mxu0 0.0
    %956 = vmatpush.msra.mxu0 0.0
    %957 = vmatpush.msra.mxu0 0.0
    %958 = vmatpush.msra.mxu0 0.0
    %959 = vmatpush.msra.mxu0 0.0
    %960 = vmatpush.msra.mxu0 0.0
    %961 = vmatpush.msra.mxu0 0.0
    %962 = vmatpush.msra.mxu0 0.0
    %963 = vmatpush.msra.mxu0 0.0
    %964 = vmatpush.msra.mxu0 0.0
    %965 = vmatpush.msra.mxu0 0.0
    %966 = vmatpush.msra.mxu0 0.0
    %967 = vmatpush.msra.mxu0 0.0
    %968 = vmatpush.msra.mxu0 %v941
    %969 = vmatpush.msra.mxu0 %v937
    %970 = vmatmul.f32.gmra.mxu0 %v949
    %v971 = vpop.f32.mrf.mxu0
    %v972 = vadd.f32 0.0, %v971
    %973 = vmatmul.f32.gmra.mxu0 %v952
    %v974 = vpop.f32.mrf.mxu0
    %v975 = vadd.f32 0.0, %v974
    %976 = vdwg.mxu0
    %977 = vmatpush.msra.mxu0 0.0
    %978 = vmatpush.msra.mxu0 0.0
    %979 = vmatpush.msra.mxu0 0.0
    %980 = vmatpush.msra.mxu0 0.0
    %981 = vmatpush.msra.mxu0 0.0
    %982 = vmatpush.msra.mxu0 0.0
    %983 = vmatpush.msra.mxu0 0.0
    %984 = vmatpush.msra.mxu0 0.0
    %985 = vmatpush.msra.mxu0 0.0
    %986 = vmatpush.msra.mxu0 0.0
    %987 = vmatpush.msra.mxu0 0.0
    %988 = vmatpush.msra.mxu0 0.0
    %989 = vmatpush.msra.mxu0 0.0
    %990 = vmatpush.msra.mxu0 0.0
    %991 = vmatpush.msra.mxu0 %v942
    %992 = vmatpush.msra.mxu0 %v938
    %993 = vmatmul.f32.gmra.mxu0 %v949
    %v994 = vpop.f32.mrf.mxu0
    %v995 = vadd.f32 0.0, %v994
    %996 = vmatmul.f32.gmra.mxu0 %v952
    %v997 = vpop.f32.mrf.mxu0
    %v998 = vadd.f32 0.0, %v997
    %999 = vdwg.mxu0
    %1000 = vmatpush.msra.mxu0 0.0
    %1001 = vmatpush.msra.mxu0 0.0
    %1002 = vmatpush.msra.mxu0 0.0
    %1003 = vmatpush.msra.mxu0 0.0
    %1004 = vmatpush.msra.mxu0 0.0
    %1005 = vmatpush.msra.mxu0 0.0
    %1006 = vmatpush.msra.mxu0 0.0
    %1007 = vmatpush.msra.mxu0 0.0
    %1008 = vmatpush.msra.mxu0 0.0
    %1009 = vmatpush.msra.mxu0 0.0
    %1010 = vmatpush.msra.mxu0 0.0
    %1011 = vmatpush.msra.mxu0 0.0
    %1012 = vmatpush.msra.mxu0 0.0
    %1013 = vmatpush.msra.mxu0 0.0
    %1014 = vmatpush.msra.mxu0 %v943
    %1015 = vmatpush.msra.mxu0 %v939
    %1016 = vmatmul.f32.gmra.mxu0 %v949
    %v1017 = vpop.f32.mrf.mxu0
    %v1018 = vadd.f32 0.0, %v1017
    %1019 = vmatmul.f32.gmra.mxu0 %v952
    %v1020 = vpop.f32.mrf.mxu0
    %v1021 = vadd.f32 0.0, %v1020
    %1022 = vdwg.mxu0
    %1023 = vmatpush.msra.mxu0 0.0
    %1024 = vmatpush.msra.mxu0 0.0
    %1025 = vmatpush.msra.mxu0 0.0
    %1026 = vmatpush.msra.mxu0 0.0
    %1027 = vmatpush.msra.mxu0 0.0
    %1028 = vmatpush.msra.mxu0 0.0
    %1029 = vmatpush.msra.mxu0 0.0
    %1030 = vmatpush.msra.mxu0 0.0
    %1031 = vmatpush.msra.mxu0 0.0
    %1032 = vmatpush.msra.mxu0 0.0
    %1033 = vmatpush.msra.mxu0 0.0
    %1034 = vmatpush.msra.mxu0 0.0
    %1035 = vmatpush.msra.mxu0 0.0
    %1036 = vmatpush.msra.mxu0 0.0
    %1037 = vmatpush.msra.mxu0 %v944
    %1038 = vmatpush.msra.mxu0 %v940
    %1039 = vmatmul.f32.gmra.mxu0 %v949
    %v1040 = vpop.f32.mrf.mxu0
    %v1041 = vadd.f32 0.0, %v1040
    %1042 = vmatmul.f32.gmra.mxu0 %v952
    %v1043 = vpop.f32.mrf.mxu0
    %v1044 = vadd.f32 0.0, %v1043
    %1045 = vdwg.mxu0
    %v1046 = vadd.f32 %v900, %v972
    %v1047 = vadd.f32 %v901, %v995
    %v1048 = vadd.f32 %v902, %v1018
    %v1049 = vadd.f32 %v903, %v1041
    %v1050 = vadd.f32 %v904, %v975
    %v1051 = vadd.f32 %v905, %v998
    %v1052 = vadd.f32 %v906, %v1021
    %v1053 = vadd.f32 %v907, %v1044
    %1054 = vrot.lane.b32.xlu0 %v71, 112
    %v1055 = vpop.permute.xlu0 %1054
    %1056 = vrot.lane.b32.xlu0 %v75, 112
    %v1057 = vpop.permute.xlu0 %1056
    %1058 = vrot.lane.b32.xlu0 %v72, 112
    %v1059 = vpop.permute.xlu0 %1058
    %1060 = vrot.lane.b32.xlu0 %v76, 112
    %v1061 = vpop.permute.xlu0 %1060
    %1062 = vrot.lane.b32.xlu0 %v73, 112
    %v1063 = vpop.permute.xlu0 %1062
    %1064 = vrot.lane.b32.xlu0 %v77, 112
    %v1065 = vpop.permute.xlu0 %1064
    %1066 = vrot.lane.b32.xlu0 %v74, 112
    %v1067 = vpop.permute.xlu0 %1066
    %1068 = vrot.lane.b32.xlu0 %v78, 112
    %v1069 = vpop.permute.xlu0 %1068
    %vm1070 = vcmp.lt.s32.totalorder %v103, 112
    %v1071 = vsel %vm1070, %v1063, %v1067
    %v1072 = vsel %vm1070, %v1065, %v1069
    %v1073 = vsel %vm1070, %v1059, %v1063
    %v1074 = vsel %vm1070, %v1061, %v1065
    %v1075 = vsel %vm1070, %v1055, %v1059
    %v1076 = vsel %vm1070, %v1057, %v1061
    %v1077 = vsel %vm1070, %v1067, %v1055
    %v1078 = vsel %vm1070, %v1069, %v1057
    %v1079 = vperm.slane %v79, 6
    %v1080 = vperm.slane %v80, 6
    %v1081 = vperm.slane %v81, 6
    %v1082 = vperm.slane %v82, 6
    %v1083 = vmul.f32 %v1075, %v1079
    %v1084 = vmul.f32 %v1073, %v1080
    %v1085 = vmul.f32 %v1071, %v1081
    %v1086 = vmul.f32 %v1077, %v1082
    %v1087 = vmul.f32 %v1076, %v1079
    %v1088 = vmul.f32 %v1074, %v1080
    %v1089 = vmul.f32 %v1072, %v1081
    %v1090 = vmul.f32 %v1078, %v1082
    %s1091 = scalar_lea.vmem [#allocation5], 112
    %v1092 = vld [vmem:[%s1091] sm:$0xff]
    %v1093 = vld [vmem:[%s1091 + $0x8] sm:$0xff]
    %v1095 = vsel %vm127, %v1092, 0
    %v1098 = vsel %vm127, %v1093, 0
    %1100 = vmatpush.msra.mxu0 0.0
    %1101 = vmatpush.msra.mxu0 0.0
    %1102 = vmatpush.msra.mxu0 0.0
    %1103 = vmatpush.msra.mxu0 0.0
    %1104 = vmatpush.msra.mxu0 0.0
    %1105 = vmatpush.msra.mxu0 0.0
    %1106 = vmatpush.msra.mxu0 0.0
    %1107 = vmatpush.msra.mxu0 0.0
    %1108 = vmatpush.msra.mxu0 0.0
    %1109 = vmatpush.msra.mxu0 0.0
    %1110 = vmatpush.msra.mxu0 0.0
    %1111 = vmatpush.msra.mxu0 0.0
    %1112 = vmatpush.msra.mxu0 0.0
    %1113 = vmatpush.msra.mxu0 0.0
    %1114 = vmatpush.msra.mxu0 %v1087
    %1115 = vmatpush.msra.mxu0 %v1083
    %1116 = vmatmul.f32.gmra.mxu0 %v1095
    %v1117 = vpop.f32.mrf.mxu0
    %v1118 = vadd.f32 0.0, %v1117
    %1119 = vmatmul.f32.gmra.mxu0 %v1098
    %v1120 = vpop.f32.mrf.mxu0
    %v1121 = vadd.f32 0.0, %v1120
    %1122 = vdwg.mxu0
    %1123 = vmatpush.msra.mxu0 0.0
    %1124 = vmatpush.msra.mxu0 0.0
    %1125 = vmatpush.msra.mxu0 0.0
    %1126 = vmatpush.msra.mxu0 0.0
    %1127 = vmatpush.msra.mxu0 0.0
    %1128 = vmatpush.msra.mxu0 0.0
    %1129 = vmatpush.msra.mxu0 0.0
    %1130 = vmatpush.msra.mxu0 0.0
    %1131 = vmatpush.msra.mxu0 0.0
    %1132 = vmatpush.msra.mxu0 0.0
    %1133 = vmatpush.msra.mxu0 0.0
    %1134 = vmatpush.msra.mxu0 0.0
    %1135 = vmatpush.msra.mxu0 0.0
    %1136 = vmatpush.msra.mxu0 0.0
    %1137 = vmatpush.msra.mxu0 %v1088
    %1138 = vmatpush.msra.mxu0 %v1084
    %1139 = vmatmul.f32.gmra.mxu0 %v1095
    %v1140 = vpop.f32.mrf.mxu0
    %v1141 = vadd.f32 0.0, %v1140
    %1142 = vmatmul.f32.gmra.mxu0 %v1098
    %v1143 = vpop.f32.mrf.mxu0
    %v1144 = vadd.f32 0.0, %v1143
    %1145 = vdwg.mxu0
    %1146 = vmatpush.msra.mxu0 0.0
    %1147 = vmatpush.msra.mxu0 0.0
    %1148 = vmatpush.msra.mxu0 0.0
    %1149 = vmatpush.msra.mxu0 0.0
    %1150 = vmatpush.msra.mxu0 0.0
    %1151 = vmatpush.msra.mxu0 0.0
    %1152 = vmatpush.msra.mxu0 0.0
    %1153 = vmatpush.msra.mxu0 0.0
    %1154 = vmatpush.msra.mxu0 0.0
    %1155 = vmatpush.msra.mxu0 0.0
    %1156 = vmatpush.msra.mxu0 0.0
    %1157 = vmatpush.msra.mxu0 0.0
    %1158 = vmatpush.msra.mxu0 0.0
    %1159 = vmatpush.msra.mxu0 0.0
    %1160 = vmatpush.msra.mxu0 %v1089
    %1161 = vmatpush.msra.mxu0 %v1085
    %1162 = vmatmul.f32.gmra.mxu0 %v1095
    %v1163 = vpop.f32.mrf.mxu0
    %v1164 = vadd.f32 0.0, %v1163
    %1165 = vmatmul.f32.gmra.mxu0 %v1098
    %v1166 = vpop.f32.mrf.mxu0
    %v1167 = vadd.f32 0.0, %v1166
    %1168 = vdwg.mxu0
    %1169 = vmatpush.msra.mxu0 0.0
    %1170 = vmatpush.msra.mxu0 0.0
    %1171 = vmatpush.msra.mxu0 0.0
    %1172 = vmatpush.msra.mxu0 0.0
    %1173 = vmatpush.msra.mxu0 0.0
    %1174 = vmatpush.msra.mxu0 0.0
    %1175 = vmatpush.msra.mxu0 0.0
    %1176 = vmatpush.msra.mxu0 0.0
    %1177 = vmatpush.msra.mxu0 0.0
    %1178 = vmatpush.msra.mxu0 0.0
    %1179 = vmatpush.msra.mxu0 0.0
    %1180 = vmatpush.msra.mxu0 0.0
    %1181 = vmatpush.msra.mxu0 0.0
    %1182 = vmatpush.msra.mxu0 0.0
    %1183 = vmatpush.msra.mxu0 %v1090
    %1184 = vmatpush.msra.mxu0 %v1086
    %1185 = vmatmul.f32.gmra.mxu0 %v1095
    %v1186 = vpop.f32.mrf.mxu0
    %v1187 = vadd.f32 0.0, %v1186
    %1188 = vmatmul.f32.gmra.mxu0 %v1098
    %v1189 = vpop.f32.mrf.mxu0
    %v1190 = vadd.f32 0.0, %v1189
    %1191 = vdwg.mxu0
    %v1192 = vadd.f32 %v1046, %v1118
    %v1193 = vadd.f32 %v1047, %v1141
    %v1194 = vadd.f32 %v1048, %v1164
    %v1195 = vadd.f32 %v1049, %v1187
    %v1196 = vadd.f32 %v1050, %v1121
    %v1197 = vadd.f32 %v1051, %v1144
    %v1198 = vadd.f32 %v1052, %v1167
    %v1199 = vadd.f32 %v1053, %v1190
    %1200 = vrot.lane.b32.xlu0 %v71, 111
    %v1201 = vpop.permute.xlu0 %1200
    %1202 = vrot.lane.b32.xlu0 %v75, 111
    %v1203 = vpop.permute.xlu0 %1202
    %1204 = vrot.lane.b32.xlu0 %v72, 111
    %v1205 = vpop.permute.xlu0 %1204
    %1206 = vrot.lane.b32.xlu0 %v76, 111
    %v1207 = vpop.permute.xlu0 %1206
    %1208 = vrot.lane.b32.xlu0 %v73, 111
    %v1209 = vpop.permute.xlu0 %1208
    %1210 = vrot.lane.b32.xlu0 %v77, 111
    %v1211 = vpop.permute.xlu0 %1210
    %1212 = vrot.lane.b32.xlu0 %v74, 111
    %v1213 = vpop.permute.xlu0 %1212
    %1214 = vrot.lane.b32.xlu0 %v78, 111
    %v1215 = vpop.permute.xlu0 %1214
    %vm1216 = vcmp.lt.s32.totalorder %v103, 111
    %v1217 = vsel %vm1216, %v1209, %v1213
    %v1218 = vsel %vm1216, %v1211, %v1215
    %v1219 = vsel %vm1216, %v1205, %v1209
    %v1220 = vsel %vm1216, %v1207, %v1211
    %v1221 = vsel %vm1216, %v1201, %v1205
    %v1222 = vsel %vm1216, %v1203, %v1207
    %v1223 = vsel %vm1216, %v1213, %v1201
    %v1224 = vsel %vm1216, %v1215, %v1203
    %v1225 = vperm.slane %v79, 7
    %v1226 = vperm.slane %v80, 7
    %v1227 = vperm.slane %v81, 7
    %v1228 = vperm.slane %v82, 7
    %v1229 = vmul.f32 %v1221, %v1225
    %v1230 = vmul.f32 %v1219, %v1226
    %v1231 = vmul.f32 %v1217, %v1227
    %v1232 = vmul.f32 %v1223, %v1228
    %v1233 = vmul.f32 %v1222, %v1225
    %v1234 = vmul.f32 %v1220, %v1226
    %v1235 = vmul.f32 %v1218, %v1227
    %v1236 = vmul.f32 %v1224, %v1228
    %s1237 = scalar_lea.vmem [#allocation5], 128
    %v1238 = vld [vmem:[%s1237] sm:$0xff]
    %v1239 = vld [vmem:[%s1237 + $0x8] sm:$0xff]
    %v1241 = vsel %vm127, %v1238, 0
    %v1244 = vsel %vm127, %v1239, 0
    %1246 = vmatpush.msra.mxu0 0.0
    %1247 = vmatpush.msra.mxu0 0.0
    %1248 = vmatpush.msra.mxu0 0.0
    %1249 = vmatpush.msra.mxu0 0.0
    %1250 = vmatpush.msra.mxu0 0.0
    %1251 = vmatpush.msra.mxu0 0.0
    %1252 = vmatpush.msra.mxu0 0.0
    %1253 = vmatpush.msra.mxu0 0.0
    %1254 = vmatpush.msra.mxu0 0.0
    %1255 = vmatpush.msra.mxu0 0.0
    %1256 = vmatpush.msra.mxu0 0.0
    %1257 = vmatpush.msra.mxu0 0.0
    %1258 = vmatpush.msra.mxu0 0.0
    %1259 = vmatpush.msra.mxu0 0.0
    %1260 = vmatpush.msra.mxu0 %v1233
    %1261 = vmatpush.msra.mxu0 %v1229
    %1262 = vmatmul.f32.gmra.mxu0 %v1241
    %v1263 = vpop.f32.mrf.mxu0
    %v1264 = vadd.f32 0.0, %v1263
    %1265 = vmatmul.f32.gmra.mxu0 %v1244
    %v1266 = vpop.f32.mrf.mxu0
    %v1267 = vadd.f32 0.0, %v1266
    %1268 = vdwg.mxu0
    %1269 = vmatpush.msra.mxu0 0.0
    %1270 = vmatpush.msra.mxu0 0.0
    %1271 = vmatpush.msra.mxu0 0.0
    %1272 = vmatpush.msra.mxu0 0.0
    %1273 = vmatpush.msra.mxu0 0.0
    %1274 = vmatpush.msra.mxu0 0.0
    %1275 = vmatpush.msra.mxu0 0.0
    %1276 = vmatpush.msra.mxu0 0.0
    %1277 = vmatpush.msra.mxu0 0.0
    %1278 = vmatpush.msra.mxu0 0.0
    %1279 = vmatpush.msra.mxu0 0.0
    %1280 = vmatpush.msra.mxu0 0.0
    %1281 = vmatpush.msra.mxu0 0.0
    %1282 = vmatpush.msra.mxu0 0.0
    %1283 = vmatpush.msra.mxu0 %v1234
    %1284 = vmatpush.msra.mxu0 %v1230
    %1285 = vmatmul.f32.gmra.mxu0 %v1241
    %v1286 = vpop.f32.mrf.mxu0
    %v1287 = vadd.f32 0.0, %v1286
    %1288 = vmatmul.f32.gmra.mxu0 %v1244
    %v1289 = vpop.f32.mrf.mxu0
    %v1290 = vadd.f32 0.0, %v1289
    %1291 = vdwg.mxu0
    %1292 = vmatpush.msra.mxu0 0.0
    %1293 = vmatpush.msra.mxu0 0.0
    %1294 = vmatpush.msra.mxu0 0.0
    %1295 = vmatpush.msra.mxu0 0.0
    %1296 = vmatpush.msra.mxu0 0.0
    %1297 = vmatpush.msra.mxu0 0.0
    %1298 = vmatpush.msra.mxu0 0.0
    %1299 = vmatpush.msra.mxu0 0.0
    %1300 = vmatpush.msra.mxu0 0.0
    %1301 = vmatpush.msra.mxu0 0.0
    %1302 = vmatpush.msra.mxu0 0.0
    %1303 = vmatpush.msra.mxu0 0.0
    %1304 = vmatpush.msra.mxu0 0.0
    %1305 = vmatpush.msra.mxu0 0.0
    %1306 = vmatpush.msra.mxu0 %v1235
    %1307 = vmatpush.msra.mxu0 %v1231
    %1308 = vmatmul.f32.gmra.mxu0 %v1241
    %v1309 = vpop.f32.mrf.mxu0
    %v1310 = vadd.f32 0.0, %v1309
    %1311 = vmatmul.f32.gmra.mxu0 %v1244
    %v1312 = vpop.f32.mrf.mxu0
    %v1313 = vadd.f32 0.0, %v1312
    %1314 = vdwg.mxu0
    %1315 = vmatpush.msra.mxu0 0.0
    %1316 = vmatpush.msra.mxu0 0.0
    %1317 = vmatpush.msra.mxu0 0.0
    %1318 = vmatpush.msra.mxu0 0.0
    %1319 = vmatpush.msra.mxu0 0.0
    %1320 = vmatpush.msra.mxu0 0.0
    %1321 = vmatpush.msra.mxu0 0.0
    %1322 = vmatpush.msra.mxu0 0.0
    %1323 = vmatpush.msra.mxu0 0.0
    %1324 = vmatpush.msra.mxu0 0.0
    %1325 = vmatpush.msra.mxu0 0.0
    %1326 = vmatpush.msra.mxu0 0.0
    %1327 = vmatpush.msra.mxu0 0.0
    %1328 = vmatpush.msra.mxu0 0.0
    %1329 = vmatpush.msra.mxu0 %v1236
    %1330 = vmatpush.msra.mxu0 %v1232
    %1331 = vmatmul.f32.gmra.mxu0 %v1241
    %v1332 = vpop.f32.mrf.mxu0
    %v1333 = vadd.f32 0.0, %v1332
    %1334 = vmatmul.f32.gmra.mxu0 %v1244
    %v1335 = vpop.f32.mrf.mxu0
    %v1336 = vadd.f32 0.0, %v1335
    %1337 = vdwg.mxu0
    %v1338 = vadd.f32 %v1192, %v1264
    %v1339 = vadd.f32 %v1193, %v1287
    %v1340 = vadd.f32 %v1194, %v1310
    %v1341 = vadd.f32 %v1195, %v1333
    %v1342 = vadd.f32 %v1196, %v1267
    %v1343 = vadd.f32 %v1197, %v1290
    %v1344 = vadd.f32 %v1198, %v1313
    %v1345 = vadd.f32 %v1199, %v1336
    %v1346 = vld [vmem:[%s3] sm:$0xff]
    %v1347 = vld [vmem:[%s3 + $0x8] sm:$0xff]
    %1349 = vset.pattern.permute.xlu0 0
    %1350 = vperm.xlu0 %1349, %v1346
    %v1351 = vpop.permute.xlu0 %1350
    %1354 = vset.pattern.permute.xlu0 0
    %1355 = vperm.xlu0 %1354, %v1347
    %v1356 = vpop.permute.xlu0 %1355
    %v1358 = vadd.f32 %v1338, %v1351
    %v1359 = vadd.f32 %v1339, %v1351
    %v1360 = vadd.f32 %v1340, %v1351
    %v1361 = vadd.f32 %v1341, %v1351
    %v1362 = vadd.f32 %v1342, %v1356
    %v1363 = vadd.f32 %v1343, %v1356
    %v1364 = vadd.f32 %v1344, %v1356
    %v1365 = vadd.f32 %v1345, %v1356
    %v1366 = vmax.f32 %v1358, 0.0
    %v1367 = vmax.f32 %v1359, 0.0
    %v1368 = vmax.f32 %v1360, 0.0
    %v1369 = vmax.f32 %v1361, 0.0
    %v1370 = vmax.f32 %v1362, 0.0
    %v1371 = vmax.f32 %v1363, 0.0
    %v1372 = vmax.f32 %v1364, 0.0
    %v1373 = vmax.f32 %v1365, 0.0
    %s1374 = scalar_lea.vmem [#allocation7], 64
    %v1375 = vld [vmem:[%s1374] sm:$0xff]
    %v1376 = vld [vmem:[%s1374 + $0x8] sm:$0xff]
    %1377 = vrot.lane.b32.xlu0 %v1366, 17
    %v1378 = vpop.permute.xlu0 %1377
    %1379 = vrot.lane.b32.xlu0 %v1370, 17
    %v1380 = vpop.permute.xlu0 %1379
    %1381 = vrot.lane.b32.xlu0 %v1367, 17
    %v1382 = vpop.permute.xlu0 %1381
    %1383 = vrot.lane.b32.xlu0 %v1371, 17
    %v1384 = vpop.permute.xlu0 %1383
    %1385 = vrot.lane.b32.xlu0 %v1368, 17
    %v1386 = vpop.permute.xlu0 %1385
    %1387 = vrot.lane.b32.xlu0 %v1372, 17
    %v1388 = vpop.permute.xlu0 %1387
    %1389 = vrot.lane.b32.xlu0 %v1369, 17
    %v1390 = vpop.permute.xlu0 %1389
    %1391 = vrot.lane.b32.xlu0 %v1373, 17
    %v1392 = vpop.permute.xlu0 %1391
    %v1393 = vsel %vm104, %v1386, %v1390
    %v1394 = vsel %vm104, %v1388, %v1392
    %v1395 = vsel %vm104, %v1382, %v1386
    %v1396 = vsel %vm104, %v1384, %v1388
    %v1397 = vsel %vm104, %v1378, %v1382
    %v1398 = vsel %vm104, %v1380, %v1384
    %v1399 = vsel %vm104, %v1390, %v1378
    %v1400 = vsel %vm104, %v1392, %v1380
    %v1401 = vmul.f32 %v1399, %v113
    %v1402 = vmul.f32 %v1397, %v114
    %v1403 = vmul.f32 %v1395, %v115
    %v1404 = vmul.f32 %v1393, %v116
    %v1405 = vmul.f32 %v1400, %v113
    %v1406 = vmul.f32 %v1398, %v114
    %v1407 = vmul.f32 %v1396, %v115
    %v1408 = vmul.f32 %v1394, %v116
    %v1409 = vld [vmem:[#allocation7] sm:$0xff]
    %v1410 = vld [vmem:[#allocation7 + $0x8] sm:$0xff]
    %v1412 = vsel %vm127, %v1409, 0
    %v1415 = vsel %vm127, %v1410, 0
    %1417 = vmatpush.msra.mxu0 0.0
    %1418 = vmatpush.msra.mxu0 0.0
    %1419 = vmatpush.msra.mxu0 0.0
    %1420 = vmatpush.msra.mxu0 0.0
    %1421 = vmatpush.msra.mxu0 0.0
    %1422 = vmatpush.msra.mxu0 0.0
    %1423 = vmatpush.msra.mxu0 0.0
    %1424 = vmatpush.msra.mxu0 0.0
    %1425 = vmatpush.msra.mxu0 0.0
    %1426 = vmatpush.msra.mxu0 0.0
    %1427 = vmatpush.msra.mxu0 0.0
    %1428 = vmatpush.msra.mxu0 0.0
    %1429 = vmatpush.msra.mxu0 0.0
    %1430 = vmatpush.msra.mxu0 0.0
    %1431 = vmatpush.msra.mxu0 %v1405
    %1432 = vmatpush.msra.mxu0 %v1401
    %1433 = vmatmul.f32.gmra.mxu0 %v1412
    %v1434 = vpop.f32.mrf.mxu0
    %v1435 = vadd.f32 0.0, %v1434
    %1436 = vmatmul.f32.gmra.mxu0 %v1415
    %v1437 = vpop.f32.mrf.mxu0
    %v1438 = vadd.f32 0.0, %v1437
    %1439 = vdwg.mxu0
    %1440 = vmatpush.msra.mxu0 0.0
    %1441 = vmatpush.msra.mxu0 0.0
    %1442 = vmatpush.msra.mxu0 0.0
    %1443 = vmatpush.msra.mxu0 0.0
    %1444 = vmatpush.msra.mxu0 0.0
    %1445 = vmatpush.msra.mxu0 0.0
    %1446 = vmatpush.msra.mxu0 0.0
    %1447 = vmatpush.msra.mxu0 0.0
    %1448 = vmatpush.msra.mxu0 0.0
    %1449 = vmatpush.msra.mxu0 0.0
    %1450 = vmatpush.msra.mxu0 0.0
    %1451 = vmatpush.msra.mxu0 0.0
    %1452 = vmatpush.msra.mxu0 0.0
    %1453 = vmatpush.msra.mxu0 0.0
    %1454 = vmatpush.msra.mxu0 %v1406
    %1455 = vmatpush.msra.mxu0 %v1402
    %1456 = vmatmul.f32.gmra.mxu0 %v1412
    %v1457 = vpop.f32.mrf.mxu0
    %v1458 = vadd.f32 0.0, %v1457
    %1459 = vmatmul.f32.gmra.mxu0 %v1415
    %v1460 = vpop.f32.mrf.mxu0
    %v1461 = vadd.f32 0.0, %v1460
    %1462 = vdwg.mxu0
    %1463 = vmatpush.msra.mxu0 0.0
    %1464 = vmatpush.msra.mxu0 0.0
    %1465 = vmatpush.msra.mxu0 0.0
    %1466 = vmatpush.msra.mxu0 0.0
    %1467 = vmatpush.msra.mxu0 0.0
    %1468 = vmatpush.msra.mxu0 0.0
    %1469 = vmatpush.msra.mxu0 0.0
    %1470 = vmatpush.msra.mxu0 0.0
    %1471 = vmatpush.msra.mxu0 0.0
    %1472 = vmatpush.msra.mxu0 0.0
    %1473 = vmatpush.msra.mxu0 0.0
    %1474 = vmatpush.msra.mxu0 0.0
    %1475 = vmatpush.msra.mxu0 0.0
    %1476 = vmatpush.msra.mxu0 0.0
    %1477 = vmatpush.msra.mxu0 %v1407
    %1478 = vmatpush.msra.mxu0 %v1403
    %1479 = vmatmul.f32.gmra.mxu0 %v1412
    %v1480 = vpop.f32.mrf.mxu0
    %v1481 = vadd.f32 0.0, %v1480
    %1482 = vmatmul.f32.gmra.mxu0 %v1415
    %v1483 = vpop.f32.mrf.mxu0
    %v1484 = vadd.f32 0.0, %v1483
    %1485 = vdwg.mxu0
    %1486 = vmatpush.msra.mxu0 0.0
    %1487 = vmatpush.msra.mxu0 0.0
    %1488 = vmatpush.msra.mxu0 0.0
    %1489 = vmatpush.msra.mxu0 0.0
    %1490 = vmatpush.msra.mxu0 0.0
    %1491 = vmatpush.msra.mxu0 0.0
    %1492 = vmatpush.msra.mxu0 0.0
    %1493 = vmatpush.msra.mxu0 0.0
    %1494 = vmatpush.msra.mxu0 0.0
    %1495 = vmatpush.msra.mxu0 0.0
    %1496 = vmatpush.msra.mxu0 0.0
    %1497 = vmatpush.msra.mxu0 0.0
    %1498 = vmatpush.msra.mxu0 0.0
    %1499 = vmatpush.msra.mxu0 0.0
    %1500 = vmatpush.msra.mxu0 %v1408
    %1501 = vmatpush.msra.mxu0 %v1404
    %1502 = vmatmul.f32.gmra.mxu0 %v1412
    %v1503 = vpop.f32.mrf.mxu0
    %v1504 = vadd.f32 0.0, %v1503
    %1505 = vmatmul.f32.gmra.mxu0 %v1415
    %v1506 = vpop.f32.mrf.mxu0
    %v1507 = vadd.f32 0.0, %v1506
    %1508 = vdwg.mxu0
    %v1510 = vsel %vm127, %v1375, 0
    %v1513 = vsel %vm127, %v1376, 0
    %1515 = vmatpush.msra.mxu0 0.0
    %1516 = vmatpush.msra.mxu0 0.0
    %1517 = vmatpush.msra.mxu0 0.0
    %1518 = vmatpush.msra.mxu0 0.0
    %1519 = vmatpush.msra.mxu0 0.0
    %1520 = vmatpush.msra.mxu0 0.0
    %1521 = vmatpush.msra.mxu0 0.0
    %1522 = vmatpush.msra.mxu0 0.0
    %1523 = vmatpush.msra.mxu0 0.0
    %1524 = vmatpush.msra.mxu0 0.0
    %1525 = vmatpush.msra.mxu0 0.0
    %1526 = vmatpush.msra.mxu0 0.0
    %1527 = vmatpush.msra.mxu0 0.0
    %1528 = vmatpush.msra.mxu0 0.0
    %1529 = vmatpush.msra.mxu0 %v1370
    %1530 = vmatpush.msra.mxu0 %v1366
    %1531 = vmatmul.f32.gmra.mxu0 %v1510
    %v1532 = vpop.f32.mrf.mxu0
    %v1533 = vadd.f32 %v1435, %v1532
    %1534 = vmatmul.f32.gmra.mxu0 %v1513
    %v1535 = vpop.f32.mrf.mxu0
    %v1536 = vadd.f32 %v1438, %v1535
    %1537 = vdwg.mxu0
    %1538 = vmatpush.msra.mxu0 0.0
    %1539 = vmatpush.msra.mxu0 0.0
    %1540 = vmatpush.msra.mxu0 0.0
    %1541 = vmatpush.msra.mxu0 0.0
    %1542 = vmatpush.msra.mxu0 0.0
    %1543 = vmatpush.msra.mxu0 0.0
    %1544 = vmatpush.msra.mxu0 0.0
    %1545 = vmatpush.msra.mxu0 0.0
    %1546 = vmatpush.msra.mxu0 0.0
    %1547 = vmatpush.msra.mxu0 0.0
    %1548 = vmatpush.msra.mxu0 0.0
    %1549 = vmatpush.msra.mxu0 0.0
    %1550 = vmatpush.msra.mxu0 0.0
    %1551 = vmatpush.msra.mxu0 0.0
    %1552 = vmatpush.msra.mxu0 %v1371
    %1553 = vmatpush.msra.mxu0 %v1367
    %1554 = vmatmul.f32.gmra.mxu0 %v1510
    %v1555 = vpop.f32.mrf.mxu0
    %v1556 = vadd.f32 %v1458, %v1555
    %1557 = vmatmul.f32.gmra.mxu0 %v1513
    %v1558 = vpop.f32.mrf.mxu0
    %v1559 = vadd.f32 %v1461, %v1558
    %1560 = vdwg.mxu0
    %1561 = vmatpush.msra.mxu0 0.0
    %1562 = vmatpush.msra.mxu0 0.0
    %1563 = vmatpush.msra.mxu0 0.0
    %1564 = vmatpush.msra.mxu0 0.0
    %1565 = vmatpush.msra.mxu0 0.0
    %1566 = vmatpush.msra.mxu0 0.0
    %1567 = vmatpush.msra.mxu0 0.0
    %1568 = vmatpush.msra.mxu0 0.0
    %1569 = vmatpush.msra.mxu0 0.0
    %1570 = vmatpush.msra.mxu0 0.0
    %1571 = vmatpush.msra.mxu0 0.0
    %1572 = vmatpush.msra.mxu0 0.0
    %1573 = vmatpush.msra.mxu0 0.0
    %1574 = vmatpush.msra.mxu0 0.0
    %1575 = vmatpush.msra.mxu0 %v1372
    %1576 = vmatpush.msra.mxu0 %v1368
    %1577 = vmatmul.f32.gmra.mxu0 %v1510
    %v1578 = vpop.f32.mrf.mxu0
    %v1579 = vadd.f32 %v1481, %v1578
    %1580 = vmatmul.f32.gmra.mxu0 %v1513
    %v1581 = vpop.f32.mrf.mxu0
    %v1582 = vadd.f32 %v1484, %v1581
    %1583 = vdwg.mxu0
    %1584 = vmatpush.msra.mxu0 0.0
    %1585 = vmatpush.msra.mxu0 0.0
    %1586 = vmatpush.msra.mxu0 0.0
    %1587 = vmatpush.msra.mxu0 0.0
    %1588 = vmatpush.msra.mxu0 0.0
    %1589 = vmatpush.msra.mxu0 0.0
    %1590 = vmatpush.msra.mxu0 0.0
    %1591 = vmatpush.msra.mxu0 0.0
    %1592 = vmatpush.msra.mxu0 0.0
    %1593 = vmatpush.msra.mxu0 0.0
    %1594 = vmatpush.msra.mxu0 0.0
    %1595 = vmatpush.msra.mxu0 0.0
    %1596 = vmatpush.msra.mxu0 0.0
    %1597 = vmatpush.msra.mxu0 0.0
    %1598 = vmatpush.msra.mxu0 %v1373
    %1599 = vmatpush.msra.mxu0 %v1369
    %1600 = vmatmul.f32.gmra.mxu0 %v1510
    %v1601 = vpop.f32.mrf.mxu0
    %v1602 = vadd.f32 %v1504, %v1601
    %1603 = vmatmul.f32.gmra.mxu0 %v1513
    %v1604 = vpop.f32.mrf.mxu0
    %v1605 = vadd.f32 %v1507, %v1604
    %1606 = vdwg.mxu0
    %1607 = vrot.lane.b32.xlu0 %v1366, 16
    %v1608 = vpop.permute.xlu0 %1607
    %1609 = vrot.lane.b32.xlu0 %v1370, 16
    %v1610 = vpop.permute.xlu0 %1609
    %1611 = vrot.lane.b32.xlu0 %v1367, 16
    %v1612 = vpop.permute.xlu0 %1611
    %1613 = vrot.lane.b32.xlu0 %v1371, 16
    %v1614 = vpop.permute.xlu0 %1613
    %1615 = vrot.lane.b32.xlu0 %v1368, 16
    %v1616 = vpop.permute.xlu0 %1615
    %1617 = vrot.lane.b32.xlu0 %v1372, 16
    %v1618 = vpop.permute.xlu0 %1617
    %1619 = vrot.lane.b32.xlu0 %v1369, 16
    %v1620 = vpop.permute.xlu0 %1619
    %1621 = vrot.lane.b32.xlu0 %v1373, 16
    %v1622 = vpop.permute.xlu0 %1621
    %v1623 = vsel %vm340, %v1616, %v1620
    %v1624 = vsel %vm340, %v1618, %v1622
    %v1625 = vsel %vm340, %v1612, %v1616
    %v1626 = vsel %vm340, %v1614, %v1618
    %v1627 = vsel %vm340, %v1608, %v1612
    %v1628 = vsel %vm340, %v1610, %v1614
    %v1629 = vsel %vm340, %v1620, %v1608
    %v1630 = vsel %vm340, %v1622, %v1610
    %v1631 = vmul.f32 %v1629, %v349
    %v1632 = vmul.f32 %v1627, %v350
    %v1633 = vmul.f32 %v1625, %v351
    %v1634 = vmul.f32 %v1623, %v352
    %v1635 = vmul.f32 %v1630, %v349
    %v1636 = vmul.f32 %v1628, %v350
    %v1637 = vmul.f32 %v1626, %v351
    %v1638 = vmul.f32 %v1624, %v352
    %s1639 = scalar_lea.vmem [#allocation7], 16
    %v1640 = vld [vmem:[%s1639] sm:$0xff]
    %v1641 = vld [vmem:[%s1639 + $0x8] sm:$0xff]
    %v1643 = vsel %vm127, %v1640, 0
    %v1646 = vsel %vm127, %v1641, 0
    %1648 = vmatpush.msra.mxu0 0.0
    %1649 = vmatpush.msra.mxu0 0.0
    %1650 = vmatpush.msra.mxu0 0.0
    %1651 = vmatpush.msra.mxu0 0.0
    %1652 = vmatpush.msra.mxu0 0.0
    %1653 = vmatpush.msra.mxu0 0.0
    %1654 = vmatpush.msra.mxu0 0.0
    %1655 = vmatpush.msra.mxu0 0.0
    %1656 = vmatpush.msra.mxu0 0.0
    %1657 = vmatpush.msra.mxu0 0.0
    %1658 = vmatpush.msra.mxu0 0.0
    %1659 = vmatpush.msra.mxu0 0.0
    %1660 = vmatpush.msra.mxu0 0.0
    %1661 = vmatpush.msra.mxu0 0.0
    %1662 = vmatpush.msra.mxu0 %v1635
    %1663 = vmatpush.msra.mxu0 %v1631
    %1664 = vmatmul.f32.gmra.mxu0 %v1643
    %v1665 = vpop.f32.mrf.mxu0
    %v1666 = vadd.f32 0.0, %v1665
    %1667 = vmatmul.f32.gmra.mxu0 %v1646
    %v1668 = vpop.f32.mrf.mxu0
    %v1669 = vadd.f32 0.0, %v1668
    %1670 = vdwg.mxu0
    %1671 = vmatpush.msra.mxu0 0.0
    %1672 = vmatpush.msra.mxu0 0.0
    %1673 = vmatpush.msra.mxu0 0.0
    %1674 = vmatpush.msra.mxu0 0.0
    %1675 = vmatpush.msra.mxu0 0.0
    %1676 = vmatpush.msra.mxu0 0.0
    %1677 = vmatpush.msra.mxu0 0.0
    %1678 = vmatpush.msra.mxu0 0.0
    %1679 = vmatpush.msra.mxu0 0.0
    %1680 = vmatpush.msra.mxu0 0.0
    %1681 = vmatpush.msra.mxu0 0.0
    %1682 = vmatpush.msra.mxu0 0.0
    %1683 = vmatpush.msra.mxu0 0.0
    %1684 = vmatpush.msra.mxu0 0.0
    %1685 = vmatpush.msra.mxu0 %v1636
    %1686 = vmatpush.msra.mxu0 %v1632
    %1687 = vmatmul.f32.gmra.mxu0 %v1643
    %v1688 = vpop.f32.mrf.mxu0
    %v1689 = vadd.f32 0.0, %v1688
    %1690 = vmatmul.f32.gmra.mxu0 %v1646
    %v1691 = vpop.f32.mrf.mxu0
    %v1692 = vadd.f32 0.0, %v1691
    %1693 = vdwg.mxu0
    %1694 = vmatpush.msra.mxu0 0.0
    %1695 = vmatpush.msra.mxu0 0.0
    %1696 = vmatpush.msra.mxu0 0.0
    %1697 = vmatpush.msra.mxu0 0.0
    %1698 = vmatpush.msra.mxu0 0.0
    %1699 = vmatpush.msra.mxu0 0.0
    %1700 = vmatpush.msra.mxu0 0.0
    %1701 = vmatpush.msra.mxu0 0.0
    %1702 = vmatpush.msra.mxu0 0.0
    %1703 = vmatpush.msra.mxu0 0.0
    %1704 = vmatpush.msra.mxu0 0.0
    %1705 = vmatpush.msra.mxu0 0.0
    %1706 = vmatpush.msra.mxu0 0.0
    %1707 = vmatpush.msra.mxu0 0.0
    %1708 = vmatpush.msra.mxu0 %v1637
    %1709 = vmatpush.msra.mxu0 %v1633
    %1710 = vmatmul.f32.gmra.mxu0 %v1643
    %v1711 = vpop.f32.mrf.mxu0
    %v1712 = vadd.f32 0.0, %v1711
    %1713 = vmatmul.f32.gmra.mxu0 %v1646
    %v1714 = vpop.f32.mrf.mxu0
    %v1715 = vadd.f32 0.0, %v1714
    %1716 = vdwg.mxu0
    %1717 = vmatpush.msra.mxu0 0.0
    %1718 = vmatpush.msra.mxu0 0.0
    %1719 = vmatpush.msra.mxu0 0.0
    %1720 = vmatpush.msra.mxu0 0.0
    %1721 = vmatpush.msra.mxu0 0.0
    %1722 = vmatpush.msra.mxu0 0.0
    %1723 = vmatpush.msra.mxu0 0.0
    %1724 = vmatpush.msra.mxu0 0.0
    %1725 = vmatpush.msra.mxu0 0.0
    %1726 = vmatpush.msra.mxu0 0.0
    %1727 = vmatpush.msra.mxu0 0.0
    %1728 = vmatpush.msra.mxu0 0.0
    %1729 = vmatpush.msra.mxu0 0.0
    %1730 = vmatpush.msra.mxu0 0.0
    %1731 = vmatpush.msra.mxu0 %v1638
    %1732 = vmatpush.msra.mxu0 %v1634
    %1733 = vmatmul.f32.gmra.mxu0 %v1643
    %v1734 = vpop.f32.mrf.mxu0
    %v1735 = vadd.f32 0.0, %v1734
    %1736 = vmatmul.f32.gmra.mxu0 %v1646
    %v1737 = vpop.f32.mrf.mxu0
    %v1738 = vadd.f32 0.0, %v1737
    %1739 = vdwg.mxu0
    %v1740 = vadd.f32 %v1533, %v1666
    %v1741 = vadd.f32 %v1556, %v1689
    %v1742 = vadd.f32 %v1579, %v1712
    %v1743 = vadd.f32 %v1602, %v1735
    %v1744 = vadd.f32 %v1536, %v1669
    %v1745 = vadd.f32 %v1559, %v1692
    %v1746 = vadd.f32 %v1582, %v1715
    %v1747 = vadd.f32 %v1605, %v1738
    %1748 = vrot.lane.b32.xlu0 %v1366, 15
    %v1749 = vpop.permute.xlu0 %1748
    %1750 = vrot.lane.b32.xlu0 %v1370, 15
    %v1751 = vpop.permute.xlu0 %1750
    %1752 = vrot.lane.b32.xlu0 %v1367, 15
    %v1753 = vpop.permute.xlu0 %1752
    %1754 = vrot.lane.b32.xlu0 %v1371, 15
    %v1755 = vpop.permute.xlu0 %1754
    %1756 = vrot.lane.b32.xlu0 %v1368, 15
    %v1757 = vpop.permute.xlu0 %1756
    %1758 = vrot.lane.b32.xlu0 %v1372, 15
    %v1759 = vpop.permute.xlu0 %1758
    %1760 = vrot.lane.b32.xlu0 %v1369, 15
    %v1761 = vpop.permute.xlu0 %1760
    %1762 = vrot.lane.b32.xlu0 %v1373, 15
    %v1763 = vpop.permute.xlu0 %1762
    %v1764 = vsel %vm486, %v1757, %v1761
    %v1765 = vsel %vm486, %v1759, %v1763
    %v1766 = vsel %vm486, %v1753, %v1757
    %v1767 = vsel %vm486, %v1755, %v1759
    %v1768 = vsel %vm486, %v1749, %v1753
    %v1769 = vsel %vm486, %v1751, %v1755
    %v1770 = vsel %vm486, %v1761, %v1749
    %v1771 = vsel %vm486, %v1763, %v1751
    %v1772 = vmul.f32 %v1770, %v495
    %v1773 = vmul.f32 %v1768, %v496
    %v1774 = vmul.f32 %v1766, %v497
    %v1775 = vmul.f32 %v1764, %v498
    %v1776 = vmul.f32 %v1771, %v495
    %v1777 = vmul.f32 %v1769, %v496
    %v1778 = vmul.f32 %v1767, %v497
    %v1779 = vmul.f32 %v1765, %v498
    %s1780 = scalar_lea.vmem [#allocation7], 32
    %v1781 = vld [vmem:[%s1780] sm:$0xff]
    %v1782 = vld [vmem:[%s1780 + $0x8] sm:$0xff]
    %v1784 = vsel %vm127, %v1781, 0
    %v1787 = vsel %vm127, %v1782, 0
    %1789 = vmatpush.msra.mxu0 0.0
    %1790 = vmatpush.msra.mxu0 0.0
    %1791 = vmatpush.msra.mxu0 0.0
    %1792 = vmatpush.msra.mxu0 0.0
    %1793 = vmatpush.msra.mxu0 0.0
    %1794 = vmatpush.msra.mxu0 0.0
    %1795 = vmatpush.msra.mxu0 0.0
    %1796 = vmatpush.msra.mxu0 0.0
    %1797 = vmatpush.msra.mxu0 0.0
    %1798 = vmatpush.msra.mxu0 0.0
    %1799 = vmatpush.msra.mxu0 0.0
    %1800 = vmatpush.msra.mxu0 0.0
    %1801 = vmatpush.msra.mxu0 0.0
    %1802 = vmatpush.msra.mxu0 0.0
    %1803 = vmatpush.msra.mxu0 %v1776
    %1804 = vmatpush.msra.mxu0 %v1772
    %1805 = vmatmul.f32.gmra.mxu0 %v1784
    %v1806 = vpop.f32.mrf.mxu0
    %v1807 = vadd.f32 0.0, %v1806
    %1808 = vmatmul.f32.gmra.mxu0 %v1787
    %v1809 = vpop.f32.mrf.mxu0
    %v1810 = vadd.f32 0.0, %v1809
    %1811 = vdwg.mxu0
    %1812 = vmatpush.msra.mxu0 0.0
    %1813 = vmatpush.msra.mxu0 0.0
    %1814 = vmatpush.msra.mxu0 0.0
    %1815 = vmatpush.msra.mxu0 0.0
    %1816 = vmatpush.msra.mxu0 0.0
    %1817 = vmatpush.msra.mxu0 0.0
    %1818 = vmatpush.msra.mxu0 0.0
    %1819 = vmatpush.msra.mxu0 0.0
    %1820 = vmatpush.msra.mxu0 0.0
    %1821 = vmatpush.msra.mxu0 0.0
    %1822 = vmatpush.msra.mxu0 0.0
    %1823 = vmatpush.msra.mxu0 0.0
    %1824 = vmatpush.msra.mxu0 0.0
    %1825 = vmatpush.msra.mxu0 0.0
    %1826 = vmatpush.msra.mxu0 %v1777
    %1827 = vmatpush.msra.mxu0 %v1773
    %1828 = vmatmul.f32.gmra.mxu0 %v1784
    %v1829 = vpop.f32.mrf.mxu0
    %v1830 = vadd.f32 0.0, %v1829
    %1831 = vmatmul.f32.gmra.mxu0 %v1787
    %v1832 = vpop.f32.mrf.mxu0
    %v1833 = vadd.f32 0.0, %v1832
    %1834 = vdwg.mxu0
    %1835 = vmatpush.msra.mxu0 0.0
    %1836 = vmatpush.msra.mxu0 0.0
    %1837 = vmatpush.msra.mxu0 0.0
    %1838 = vmatpush.msra.mxu0 0.0
    %1839 = vmatpush.msra.mxu0 0.0
    %1840 = vmatpush.msra.mxu0 0.0
    %1841 = vmatpush.msra.mxu0 0.0
    %1842 = vmatpush.msra.mxu0 0.0
    %1843 = vmatpush.msra.mxu0 0.0
    %1844 = vmatpush.msra.mxu0 0.0
    %1845 = vmatpush.msra.mxu0 0.0
    %1846 = vmatpush.msra.mxu0 0.0
    %1847 = vmatpush.msra.mxu0 0.0
    %1848 = vmatpush.msra.mxu0 0.0
    %1849 = vmatpush.msra.mxu0 %v1778
    %1850 = vmatpush.msra.mxu0 %v1774
    %1851 = vmatmul.f32.gmra.mxu0 %v1784
    %v1852 = vpop.f32.mrf.mxu0
    %v1853 = vadd.f32 0.0, %v1852
    %1854 = vmatmul.f32.gmra.mxu0 %v1787
    %v1855 = vpop.f32.mrf.mxu0
    %v1856 = vadd.f32 0.0, %v1855
    %1857 = vdwg.mxu0
    %1858 = vmatpush.msra.mxu0 0.0
    %1859 = vmatpush.msra.mxu0 0.0
    %1860 = vmatpush.msra.mxu0 0.0
    %1861 = vmatpush.msra.mxu0 0.0
    %1862 = vmatpush.msra.mxu0 0.0
    %1863 = vmatpush.msra.mxu0 0.0
    %1864 = vmatpush.msra.mxu0 0.0
    %1865 = vmatpush.msra.mxu0 0.0
    %1866 = vmatpush.msra.mxu0 0.0
    %1867 = vmatpush.msra.mxu0 0.0
    %1868 = vmatpush.msra.mxu0 0.0
    %1869 = vmatpush.msra.mxu0 0.0
    %1870 = vmatpush.msra.mxu0 0.0
    %1871 = vmatpush.msra.mxu0 0.0
    %1872 = vmatpush.msra.mxu0 %v1779
    %1873 = vmatpush.msra.mxu0 %v1775
    %1874 = vmatmul.f32.gmra.mxu0 %v1784
    %v1875 = vpop.f32.mrf.mxu0
    %v1876 = vadd.f32 0.0, %v1875
    %1877 = vmatmul.f32.gmra.mxu0 %v1787
    %v1878 = vpop.f32.mrf.mxu0
    %v1879 = vadd.f32 0.0, %v1878
    %1880 = vdwg.mxu0
    %v1881 = vadd.f32 %v1740, %v1807
    %v1882 = vadd.f32 %v1741, %v1830
    %v1883 = vadd.f32 %v1742, %v1853
    %v1884 = vadd.f32 %v1743, %v1876
    %v1885 = vadd.f32 %v1744, %v1810
    %v1886 = vadd.f32 %v1745, %v1833
    %v1887 = vadd.f32 %v1746, %v1856
    %v1888 = vadd.f32 %v1747, %v1879
    %1889 = vrot.lane.b32.xlu0 %v1366, 1
    %v1890 = vpop.permute.xlu0 %1889
    %1891 = vrot.lane.b32.xlu0 %v1370, 1
    %v1892 = vpop.permute.xlu0 %1891
    %1893 = vrot.lane.b32.xlu0 %v1367, 1
    %v1894 = vpop.permute.xlu0 %1893
    %1895 = vrot.lane.b32.xlu0 %v1371, 1
    %v1896 = vpop.permute.xlu0 %1895
    %1897 = vrot.lane.b32.xlu0 %v1368, 1
    %v1898 = vpop.permute.xlu0 %1897
    %1899 = vrot.lane.b32.xlu0 %v1372, 1
    %v1900 = vpop.permute.xlu0 %1899
    %1901 = vrot.lane.b32.xlu0 %v1369, 1
    %v1902 = vpop.permute.xlu0 %1901
    %1903 = vrot.lane.b32.xlu0 %v1373, 1
    %v1904 = vpop.permute.xlu0 %1903
    %v1905 = vsel %vm632, %v1898, %v1902
    %v1906 = vsel %vm632, %v1900, %v1904
    %v1907 = vsel %vm632, %v1894, %v1898
    %v1908 = vsel %vm632, %v1896, %v1900
    %v1909 = vsel %vm632, %v1890, %v1894
    %v1910 = vsel %vm632, %v1892, %v1896
    %v1911 = vsel %vm632, %v1902, %v1890
    %v1912 = vsel %vm632, %v1904, %v1892
    %v1913 = vmul.f32 %v1911, %v641
    %v1914 = vmul.f32 %v1909, %v642
    %v1915 = vmul.f32 %v1907, %v643
    %v1916 = vmul.f32 %v1905, %v644
    %v1917 = vmul.f32 %v1912, %v641
    %v1918 = vmul.f32 %v1910, %v642
    %v1919 = vmul.f32 %v1908, %v643
    %v1920 = vmul.f32 %v1906, %v644
    %s1921 = scalar_lea.vmem [#allocation7], 48
    %v1922 = vld [vmem:[%s1921] sm:$0xff]
    %v1923 = vld [vmem:[%s1921 + $0x8] sm:$0xff]
    %v1925 = vsel %vm127, %v1922, 0
    %v1928 = vsel %vm127, %v1923, 0
    %1930 = vmatpush.msra.mxu0 0.0
    %1931 = vmatpush.msra.mxu0 0.0
    %1932 = vmatpush.msra.mxu0 0.0
    %1933 = vmatpush.msra.mxu0 0.0
    %1934 = vmatpush.msra.mxu0 0.0
    %1935 = vmatpush.msra.mxu0 0.0
    %1936 = vmatpush.msra.mxu0 0.0
    %1937 = vmatpush.msra.mxu0 0.0
    %1938 = vmatpush.msra.mxu0 0.0
    %1939 = vmatpush.msra.mxu0 0.0
    %1940 = vmatpush.msra.mxu0 0.0
    %1941 = vmatpush.msra.mxu0 0.0
    %1942 = vmatpush.msra.mxu0 0.0
    %1943 = vmatpush.msra.mxu0 0.0
    %1944 = vmatpush.msra.mxu0 %v1917
    %1945 = vmatpush.msra.mxu0 %v1913
    %1946 = vmatmul.f32.gmra.mxu0 %v1925
    %v1947 = vpop.f32.mrf.mxu0
    %v1948 = vadd.f32 0.0, %v1947
    %1949 = vmatmul.f32.gmra.mxu0 %v1928
    %v1950 = vpop.f32.mrf.mxu0
    %v1951 = vadd.f32 0.0, %v1950
    %1952 = vdwg.mxu0
    %1953 = vmatpush.msra.mxu0 0.0
    %1954 = vmatpush.msra.mxu0 0.0
    %1955 = vmatpush.msra.mxu0 0.0
    %1956 = vmatpush.msra.mxu0 0.0
    %1957 = vmatpush.msra.mxu0 0.0
    %1958 = vmatpush.msra.mxu0 0.0
    %1959 = vmatpush.msra.mxu0 0.0
    %1960 = vmatpush.msra.mxu0 0.0
    %1961 = vmatpush.msra.mxu0 0.0
    %1962 = vmatpush.msra.mxu0 0.0
    %1963 = vmatpush.msra.mxu0 0.0
    %1964 = vmatpush.msra.mxu0 0.0
    %1965 = vmatpush.msra.mxu0 0.0
    %1966 = vmatpush.msra.mxu0 0.0
    %1967 = vmatpush.msra.mxu0 %v1918
    %1968 = vmatpush.msra.mxu0 %v1914
    %1969 = vmatmul.f32.gmra.mxu0 %v1925
    %v1970 = vpop.f32.mrf.mxu0
    %v1971 = vadd.f32 0.0, %v1970
    %1972 = vmatmul.f32.gmra.mxu0 %v1928
    %v1973 = vpop.f32.mrf.mxu0
    %v1974 = vadd.f32 0.0, %v1973
    %1975 = vdwg.mxu0
    %1976 = vmatpush.msra.mxu0 0.0
    %1977 = vmatpush.msra.mxu0 0.0
    %1978 = vmatpush.msra.mxu0 0.0
    %1979 = vmatpush.msra.mxu0 0.0
    %1980 = vmatpush.msra.mxu0 0.0
    %1981 = vmatpush.msra.mxu0 0.0
    %1982 = vmatpush.msra.mxu0 0.0
    %1983 = vmatpush.msra.mxu0 0.0
    %1984 = vmatpush.msra.mxu0 0.0
    %1985 = vmatpush.msra.mxu0 0.0
    %1986 = vmatpush.msra.mxu0 0.0
    %1987 = vmatpush.msra.mxu0 0.0
    %1988 = vmatpush.msra.mxu0 0.0
    %1989 = vmatpush.msra.mxu0 0.0
    %1990 = vmatpush.msra.mxu0 %v1919
    %1991 = vmatpush.msra.mxu0 %v1915
    %1992 = vmatmul.f32.gmra.mxu0 %v1925
    %v1993 = vpop.f32.mrf.mxu0
    %v1994 = vadd.f32 0.0, %v1993
    %1995 = vmatmul.f32.gmra.mxu0 %v1928
    %v1996 = vpop.f32.mrf.mxu0
    %v1997 = vadd.f32 0.0, %v1996
    %1998 = vdwg.mxu0
    %1999 = vmatpush.msra.mxu0 0.0
    %2000 = vmatpush.msra.mxu0 0.0
    %2001 = vmatpush.msra.mxu0 0.0
    %2002 = vmatpush.msra.mxu0 0.0
    %2003 = vmatpush.msra.mxu0 0.0
    %2004 = vmatpush.msra.mxu0 0.0
    %2005 = vmatpush.msra.mxu0 0.0
    %2006 = vmatpush.msra.mxu0 0.0
    %2007 = vmatpush.msra.mxu0 0.0
    %2008 = vmatpush.msra.mxu0 0.0
    %2009 = vmatpush.msra.mxu0 0.0
    %2010 = vmatpush.msra.mxu0 0.0
    %2011 = vmatpush.msra.mxu0 0.0
    %2012 = vmatpush.msra.mxu0 0.0
    %2013 = vmatpush.msra.mxu0 %v1920
    %2014 = vmatpush.msra.mxu0 %v1916
    %2015 = vmatmul.f32.gmra.mxu0 %v1925
    %v2016 = vpop.f32.mrf.mxu0
    %v2017 = vadd.f32 0.0, %v2016
    %2018 = vmatmul.f32.gmra.mxu0 %v1928
    %v2019 = vpop.f32.mrf.mxu0
    %v2020 = vadd.f32 0.0, %v2019
    %2021 = vdwg.mxu0
    %v2022 = vadd.f32 %v1881, %v1948
    %v2023 = vadd.f32 %v1882, %v1971
    %v2024 = vadd.f32 %v1883, %v1994
    %v2025 = vadd.f32 %v1884, %v2017
    %v2026 = vadd.f32 %v1885, %v1951
    %v2027 = vadd.f32 %v1886, %v1974
    %v2028 = vadd.f32 %v1887, %v1997
    %v2029 = vadd.f32 %v1888, %v2020
    %2030 = vrot.lane.b32.xlu0 %v1366, 127
    %v2031 = vpop.permute.xlu0 %2030
    %2032 = vrot.lane.b32.xlu0 %v1370, 127
    %v2033 = vpop.permute.xlu0 %2032
    %2034 = vrot.lane.b32.xlu0 %v1367, 127
    %v2035 = vpop.permute.xlu0 %2034
    %2036 = vrot.lane.b32.xlu0 %v1371, 127
    %v2037 = vpop.permute.xlu0 %2036
    %2038 = vrot.lane.b32.xlu0 %v1368, 127
    %v2039 = vpop.permute.xlu0 %2038
    %2040 = vrot.lane.b32.xlu0 %v1372, 127
    %v2041 = vpop.permute.xlu0 %2040
    %2042 = vrot.lane.b32.xlu0 %v1369, 127
    %v2043 = vpop.permute.xlu0 %2042
    %2044 = vrot.lane.b32.xlu0 %v1373, 127
    %v2045 = vpop.permute.xlu0 %2044
    %v2046 = vsel %vm778, %v2039, %v2043
    %v2047 = vsel %vm778, %v2041, %v2045
    %v2048 = vsel %vm778, %v2035, %v2039
    %v2049 = vsel %vm778, %v2037, %v2041
    %v2050 = vsel %vm778, %v2031, %v2035
    %v2051 = vsel %vm778, %v2033, %v2037
    %v2052 = vsel %vm778, %v2043, %v2031
    %v2053 = vsel %vm778, %v2045, %v2033
    %v2054 = vmul.f32 %v2050, %v787
    %v2055 = vmul.f32 %v2048, %v788
    %v2056 = vmul.f32 %v2046, %v789
    %v2057 = vmul.f32 %v2052, %v790
    %v2058 = vmul.f32 %v2051, %v787
    %v2059 = vmul.f32 %v2049, %v788
    %v2060 = vmul.f32 %v2047, %v789
    %v2061 = vmul.f32 %v2053, %v790
    %s2062 = scalar_lea.vmem [#allocation7], 80
    %v2063 = vld [vmem:[%s2062] sm:$0xff]
    %v2064 = vld [vmem:[%s2062 + $0x8] sm:$0xff]
    %v2066 = vsel %vm127, %v2063, 0
    %v2069 = vsel %vm127, %v2064, 0
    %2071 = vmatpush.msra.mxu0 0.0
    %2072 = vmatpush.msra.mxu0 0.0
    %2073 = vmatpush.msra.mxu0 0.0
    %2074 = vmatpush.msra.mxu0 0.0
    %2075 = vmatpush.msra.mxu0 0.0
    %2076 = vmatpush.msra.mxu0 0.0
    %2077 = vmatpush.msra.mxu0 0.0
    %2078 = vmatpush.msra.mxu0 0.0
    %2079 = vmatpush.msra.mxu0 0.0
    %2080 = vmatpush.msra.mxu0 0.0
    %2081 = vmatpush.msra.mxu0 0.0
    %2082 = vmatpush.msra.mxu0 0.0
    %2083 = vmatpush.msra.mxu0 0.0
    %2084 = vmatpush.msra.mxu0 0.0
    %2085 = vmatpush.msra.mxu0 %v2058
    %2086 = vmatpush.msra.mxu0 %v2054
    %2087 = vmatmul.f32.gmra.mxu0 %v2066
    %v2088 = vpop.f32.mrf.mxu0
    %v2089 = vadd.f32 0.0, %v2088
    %2090 = vmatmul.f32.gmra.mxu0 %v2069
    %v2091 = vpop.f32.mrf.mxu0
    %v2092 = vadd.f32 0.0, %v2091
    %2093 = vdwg.mxu0
    %2094 = vmatpush.msra.mxu0 0.0
    %2095 = vmatpush.msra.mxu0 0.0
    %2096 = vmatpush.msra.mxu0 0.0
    %2097 = vmatpush.msra.mxu0 0.0
    %2098 = vmatpush.msra.mxu0 0.0
    %2099 = vmatpush.msra.mxu0 0.0
    %2100 = vmatpush.msra.mxu0 0.0
    %2101 = vmatpush.msra.mxu0 0.0
    %2102 = vmatpush.msra.mxu0 0.0
    %2103 = vmatpush.msra.mxu0 0.0
    %2104 = vmatpush.msra.mxu0 0.0
    %2105 = vmatpush.msra.mxu0 0.0
    %2106 = vmatpush.msra.mxu0 0.0
    %2107 = vmatpush.msra.mxu0 0.0
    %2108 = vmatpush.msra.mxu0 %v2059
    %2109 = vmatpush.msra.mxu0 %v2055
    %2110 = vmatmul.f32.gmra.mxu0 %v2066
    %v2111 = vpop.f32.mrf.mxu0
    %v2112 = vadd.f32 0.0, %v2111
    %2113 = vmatmul.f32.gmra.mxu0 %v2069
    %v2114 = vpop.f32.mrf.mxu0
    %v2115 = vadd.f32 0.0, %v2114
    %2116 = vdwg.mxu0
    %2117 = vmatpush.msra.mxu0 0.0
    %2118 = vmatpush.msra.mxu0 0.0
    %2119 = vmatpush.msra.mxu0 0.0
    %2120 = vmatpush.msra.mxu0 0.0
    %2121 = vmatpush.msra.mxu0 0.0
    %2122 = vmatpush.msra.mxu0 0.0
    %2123 = vmatpush.msra.mxu0 0.0
    %2124 = vmatpush.msra.mxu0 0.0
    %2125 = vmatpush.msra.mxu0 0.0
    %2126 = vmatpush.msra.mxu0 0.0
    %2127 = vmatpush.msra.mxu0 0.0
    %2128 = vmatpush.msra.mxu0 0.0
    %2129 = vmatpush.msra.mxu0 0.0
    %2130 = vmatpush.msra.mxu0 0.0
    %2131 = vmatpush.msra.mxu0 %v2060
    %2132 = vmatpush.msra.mxu0 %v2056
    %2133 = vmatmul.f32.gmra.mxu0 %v2066
    %v2134 = vpop.f32.mrf.mxu0
    %v2135 = vadd.f32 0.0, %v2134
    %2136 = vmatmul.f32.gmra.mxu0 %v2069
    %v2137 = vpop.f32.mrf.mxu0
    %v2138 = vadd.f32 0.0, %v2137
    %2139 = vdwg.mxu0
    %2140 = vmatpush.msra.mxu0 0.0
    %2141 = vmatpush.msra.mxu0 0.0
    %2142 = vmatpush.msra.mxu0 0.0
    %2143 = vmatpush.msra.mxu0 0.0
    %2144 = vmatpush.msra.mxu0 0.0
    %2145 = vmatpush.msra.mxu0 0.0
    %2146 = vmatpush.msra.mxu0 0.0
    %2147 = vmatpush.msra.mxu0 0.0
    %2148 = vmatpush.msra.mxu0 0.0
    %2149 = vmatpush.msra.mxu0 0.0
    %2150 = vmatpush.msra.mxu0 0.0
    %2151 = vmatpush.msra.mxu0 0.0
    %2152 = vmatpush.msra.mxu0 0.0
    %2153 = vmatpush.msra.mxu0 0.0
    %2154 = vmatpush.msra.mxu0 %v2061
    %2155 = vmatpush.msra.mxu0 %v2057
    %2156 = vmatmul.f32.gmra.mxu0 %v2066
    %v2157 = vpop.f32.mrf.mxu0
    %v2158 = vadd.f32 0.0, %v2157
    %2159 = vmatmul.f32.gmra.mxu0 %v2069
    %v2160 = vpop.f32.mrf.mxu0
    %v2161 = vadd.f32 0.0, %v2160
    %2162 = vdwg.mxu0
    %v2163 = vadd.f32 %v2022, %v2089
    %v2164 = vadd.f32 %v2023, %v2112
    %v2165 = vadd.f32 %v2024, %v2135
    %v2166 = vadd.f32 %v2025, %v2158
    %v2167 = vadd.f32 %v2026, %v2092
    %v2168 = vadd.f32 %v2027, %v2115
    %v2169 = vadd.f32 %v2028, %v2138
    %v2170 = vadd.f32 %v2029, %v2161
    %2171 = vrot.lane.b32.xlu0 %v1366, 113
    %v2172 = vpop.permute.xlu0 %2171
    %2173 = vrot.lane.b32.xlu0 %v1370, 113
    %v2174 = vpop.permute.xlu0 %2173
    %2175 = vrot.lane.b32.xlu0 %v1367, 113
    %v2176 = vpop.permute.xlu0 %2175
    %2177 = vrot.lane.b32.xlu0 %v1371, 113
    %v2178 = vpop.permute.xlu0 %2177
    %2179 = vrot.lane.b32.xlu0 %v1368, 113
    %v2180 = vpop.permute.xlu0 %2179
    %2181 = vrot.lane.b32.xlu0 %v1372, 113
    %v2182 = vpop.permute.xlu0 %2181
    %2183 = vrot.lane.b32.xlu0 %v1369, 113
    %v2184 = vpop.permute.xlu0 %2183
    %2185 = vrot.lane.b32.xlu0 %v1373, 113
    %v2186 = vpop.permute.xlu0 %2185
    %v2187 = vsel %vm924, %v2180, %v2184
    %v2188 = vsel %vm924, %v2182, %v2186
    %v2189 = vsel %vm924, %v2176, %v2180
    %v2190 = vsel %vm924, %v2178, %v2182
    %v2191 = vsel %vm924, %v2172, %v2176
    %v2192 = vsel %vm924, %v2174, %v2178
    %v2193 = vsel %vm924, %v2184, %v2172
    %v2194 = vsel %vm924, %v2186, %v2174
    %v2195 = vmul.f32 %v2191, %v933
    %v2196 = vmul.f32 %v2189, %v934
    %v2197 = vmul.f32 %v2187, %v935
    %v2198 = vmul.f32 %v2193, %v936
    %v2199 = vmul.f32 %v2192, %v933
    %v2200 = vmul.f32 %v2190, %v934
    %v2201 = vmul.f32 %v2188, %v935
    %v2202 = vmul.f32 %v2194, %v936
    %s2203 = scalar_lea.vmem [#allocation7], 96
    %v2204 = vld [vmem:[%s2203] sm:$0xff]
    %v2205 = vld [vmem:[%s2203 + $0x8] sm:$0xff]
    %v2207 = vsel %vm127, %v2204, 0
    %v2210 = vsel %vm127, %v2205, 0
    %2212 = vmatpush.msra.mxu0 0.0
    %2213 = vmatpush.msra.mxu0 0.0
    %2214 = vmatpush.msra.mxu0 0.0
    %2215 = vmatpush.msra.mxu0 0.0
    %2216 = vmatpush.msra.mxu0 0.0
    %2217 = vmatpush.msra.mxu0 0.0
    %2218 = vmatpush.msra.mxu0 0.0
    %2219 = vmatpush.msra.mxu0 0.0
    %2220 = vmatpush.msra.mxu0 0.0
    %2221 = vmatpush.msra.mxu0 0.0
    %2222 = vmatpush.msra.mxu0 0.0
    %2223 = vmatpush.msra.mxu0 0.0
    %2224 = vmatpush.msra.mxu0 0.0
    %2225 = vmatpush.msra.mxu0 0.0
    %2226 = vmatpush.msra.mxu0 %v2199
    %2227 = vmatpush.msra.mxu0 %v2195
    %2228 = vmatmul.f32.gmra.mxu0 %v2207
    %v2229 = vpop.f32.mrf.mxu0
    %v2230 = vadd.f32 0.0, %v2229
    %2231 = vmatmul.f32.gmra.mxu0 %v2210
    %v2232 = vpop.f32.mrf.mxu0
    %v2233 = vadd.f32 0.0, %v2232
    %2234 = vdwg.mxu0
    %2235 = vmatpush.msra.mxu0 0.0
    %2236 = vmatpush.msra.mxu0 0.0
    %2237 = vmatpush.msra.mxu0 0.0
    %2238 = vmatpush.msra.mxu0 0.0
    %2239 = vmatpush.msra.mxu0 0.0
    %2240 = vmatpush.msra.mxu0 0.0
    %2241 = vmatpush.msra.mxu0 0.0
    %2242 = vmatpush.msra.mxu0 0.0
    %2243 = vmatpush.msra.mxu0 0.0
    %2244 = vmatpush.msra.mxu0 0.0
    %2245 = vmatpush.msra.mxu0 0.0
    %2246 = vmatpush.msra.mxu0 0.0
    %2247 = vmatpush.msra.mxu0 0.0
    %2248 = vmatpush.msra.mxu0 0.0
    %2249 = vmatpush.msra.mxu0 %v2200
    %2250 = vmatpush.msra.mxu0 %v2196
    %2251 = vmatmul.f32.gmra.mxu0 %v2207
    %v2252 = vpop.f32.mrf.mxu0
    %v2253 = vadd.f32 0.0, %v2252
    %2254 = vmatmul.f32.gmra.mxu0 %v2210
    %v2255 = vpop.f32.mrf.mxu0
    %v2256 = vadd.f32 0.0, %v2255
    %2257 = vdwg.mxu0
    %2258 = vmatpush.msra.mxu0 0.0
    %2259 = vmatpush.msra.mxu0 0.0
    %2260 = vmatpush.msra.mxu0 0.0
    %2261 = vmatpush.msra.mxu0 0.0
    %2262 = vmatpush.msra.mxu0 0.0
    %2263 = vmatpush.msra.mxu0 0.0
    %2264 = vmatpush.msra.mxu0 0.0
    %2265 = vmatpush.msra.mxu0 0.0
    %2266 = vmatpush.msra.mxu0 0.0
    %2267 = vmatpush.msra.mxu0 0.0
    %2268 = vmatpush.msra.mxu0 0.0
    %2269 = vmatpush.msra.mxu0 0.0
    %2270 = vmatpush.msra.mxu0 0.0
    %2271 = vmatpush.msra.mxu0 0.0
    %2272 = vmatpush.msra.mxu0 %v2201
    %2273 = vmatpush.msra.mxu0 %v2197
    %2274 = vmatmul.f32.gmra.mxu0 %v2207
    %v2275 = vpop.f32.mrf.mxu0
    %v2276 = vadd.f32 0.0, %v2275
    %2277 = vmatmul.f32.gmra.mxu0 %v2210
    %v2278 = vpop.f32.mrf.mxu0
    %v2279 = vadd.f32 0.0, %v2278
    %2280 = vdwg.mxu0
    %2281 = vmatpush.msra.mxu0 0.0
    %2282 = vmatpush.msra.mxu0 0.0
    %2283 = vmatpush.msra.mxu0 0.0
    %2284 = vmatpush.msra.mxu0 0.0
    %2285 = vmatpush.msra.mxu0 0.0
    %2286 = vmatpush.msra.mxu0 0.0
    %2287 = vmatpush.msra.mxu0 0.0
    %2288 = vmatpush.msra.mxu0 0.0
    %2289 = vmatpush.msra.mxu0 0.0
    %2290 = vmatpush.msra.mxu0 0.0
    %2291 = vmatpush.msra.mxu0 0.0
    %2292 = vmatpush.msra.mxu0 0.0
    %2293 = vmatpush.msra.mxu0 0.0
    %2294 = vmatpush.msra.mxu0 0.0
    %2295 = vmatpush.msra.mxu0 %v2202
    %2296 = vmatpush.msra.mxu0 %v2198
    %2297 = vmatmul.f32.gmra.mxu0 %v2207
    %v2298 = vpop.f32.mrf.mxu0
    %v2299 = vadd.f32 0.0, %v2298
    %2300 = vmatmul.f32.gmra.mxu0 %v2210
    %v2301 = vpop.f32.mrf.mxu0
    %v2302 = vadd.f32 0.0, %v2301
    %2303 = vdwg.mxu0
    %v2304 = vadd.f32 %v2163, %v2230
    %v2305 = vadd.f32 %v2164, %v2253
    %v2306 = vadd.f32 %v2165, %v2276
    %v2307 = vadd.f32 %v2166, %v2299
    %v2308 = vadd.f32 %v2167, %v2233
    %v2309 = vadd.f32 %v2168, %v2256
    %v2310 = vadd.f32 %v2169, %v2279
    %v2311 = vadd.f32 %v2170, %v2302
    %2312 = vrot.lane.b32.xlu0 %v1366, 112
    %v2313 = vpop.permute.xlu0 %2312
    %2314 = vrot.lane.b32.xlu0 %v1370, 112
    %v2315 = vpop.permute.xlu0 %2314
    %2316 = vrot.lane.b32.xlu0 %v1367, 112
    %v2317 = vpop.permute.xlu0 %2316
    %2318 = vrot.lane.b32.xlu0 %v1371, 112
    %v2319 = vpop.permute.xlu0 %2318
    %2320 = vrot.lane.b32.xlu0 %v1368, 112
    %v2321 = vpop.permute.xlu0 %2320
    %2322 = vrot.lane.b32.xlu0 %v1372, 112
    %v2323 = vpop.permute.xlu0 %2322
    %2324 = vrot.lane.b32.xlu0 %v1369, 112
    %v2325 = vpop.permute.xlu0 %2324
    %2326 = vrot.lane.b32.xlu0 %v1373, 112
    %v2327 = vpop.permute.xlu0 %2326
    %v2328 = vsel %vm1070, %v2321, %v2325
    %v2329 = vsel %vm1070, %v2323, %v2327
    %v2330 = vsel %vm1070, %v2317, %v2321
    %v2331 = vsel %vm1070, %v2319, %v2323
    %v2332 = vsel %vm1070, %v2313, %v2317
    %v2333 = vsel %vm1070, %v2315, %v2319
    %v2334 = vsel %vm1070, %v2325, %v2313
    %v2335 = vsel %vm1070, %v2327, %v2315
    %v2336 = vmul.f32 %v2332, %v1079
    %v2337 = vmul.f32 %v2330, %v1080
    %v2338 = vmul.f32 %v2328, %v1081
    %v2339 = vmul.f32 %v2334, %v1082
    %v2340 = vmul.f32 %v2333, %v1079
    %v2341 = vmul.f32 %v2331, %v1080
    %v2342 = vmul.f32 %v2329, %v1081
    %v2343 = vmul.f32 %v2335, %v1082
    %s2344 = scalar_lea.vmem [#allocation7], 112
    %v2345 = vld [vmem:[%s2344] sm:$0xff]
    %v2346 = vld [vmem:[%s2344 + $0x8] sm:$0xff]
    %v2348 = vsel %vm127, %v2345, 0
    %v2351 = vsel %vm127, %v2346, 0
    %2353 = vmatpush.msra.mxu0 0.0
    %2354 = vmatpush.msra.mxu0 0.0
    %2355 = vmatpush.msra.mxu0 0.0
    %2356 = vmatpush.msra.mxu0 0.0
    %2357 = vmatpush.msra.mxu0 0.0
    %2358 = vmatpush.msra.mxu0 0.0
    %2359 = vmatpush.msra.mxu0 0.0
    %2360 = vmatpush.msra.mxu0 0.0
    %2361 = vmatpush.msra.mxu0 0.0
    %2362 = vmatpush.msra.mxu0 0.0
    %2363 = vmatpush.msra.mxu0 0.0
    %2364 = vmatpush.msra.mxu0 0.0
    %2365 = vmatpush.msra.mxu0 0.0
    %2366 = vmatpush.msra.mxu0 0.0
    %2367 = vmatpush.msra.mxu0 %v2340
    %2368 = vmatpush.msra.mxu0 %v2336
    %2369 = vmatmul.f32.gmra.mxu0 %v2348
    %v2370 = vpop.f32.mrf.mxu0
    %v2371 = vadd.f32 0.0, %v2370
    %2372 = vmatmul.f32.gmra.mxu0 %v2351
    %v2373 = vpop.f32.mrf.mxu0
    %v2374 = vadd.f32 0.0, %v2373
    %2375 = vdwg.mxu0
    %2376 = vmatpush.msra.mxu0 0.0
    %2377 = vmatpush.msra.mxu0 0.0
    %2378 = vmatpush.msra.mxu0 0.0
    %2379 = vmatpush.msra.mxu0 0.0
    %2380 = vmatpush.msra.mxu0 0.0
    %2381 = vmatpush.msra.mxu0 0.0
    %2382 = vmatpush.msra.mxu0 0.0
    %2383 = vmatpush.msra.mxu0 0.0
    %2384 = vmatpush.msra.mxu0 0.0
    %2385 = vmatpush.msra.mxu0 0.0
    %2386 = vmatpush.msra.mxu0 0.0
    %2387 = vmatpush.msra.mxu0 0.0
    %2388 = vmatpush.msra.mxu0 0.0
    %2389 = vmatpush.msra.mxu0 0.0
    %2390 = vmatpush.msra.mxu0 %v2341
    %2391 = vmatpush.msra.mxu0 %v2337
    %2392 = vmatmul.f32.gmra.mxu0 %v2348
    %v2393 = vpop.f32.mrf.mxu0
    %v2394 = vadd.f32 0.0, %v2393
    %2395 = vmatmul.f32.gmra.mxu0 %v2351
    %v2396 = vpop.f32.mrf.mxu0
    %v2397 = vadd.f32 0.0, %v2396
    %2398 = vdwg.mxu0
    %2399 = vmatpush.msra.mxu0 0.0
    %2400 = vmatpush.msra.mxu0 0.0
    %2401 = vmatpush.msra.mxu0 0.0
    %2402 = vmatpush.msra.mxu0 0.0
    %2403 = vmatpush.msra.mxu0 0.0
    %2404 = vmatpush.msra.mxu0 0.0
    %2405 = vmatpush.msra.mxu0 0.0
    %2406 = vmatpush.msra.mxu0 0.0
    %2407 = vmatpush.msra.mxu0 0.0
    %2408 = vmatpush.msra.mxu0 0.0
    %2409 = vmatpush.msra.mxu0 0.0
    %2410 = vmatpush.msra.mxu0 0.0
    %2411 = vmatpush.msra.mxu0 0.0
    %2412 = vmatpush.msra.mxu0 0.0
    %2413 = vmatpush.msra.mxu0 %v2342
    %2414 = vmatpush.msra.mxu0 %v2338
    %2415 = vmatmul.f32.gmra.mxu0 %v2348
    %v2416 = vpop.f32.mrf.mxu0
    %v2417 = vadd.f32 0.0, %v2416
    %2418 = vmatmul.f32.gmra.mxu0 %v2351
    %v2419 = vpop.f32.mrf.mxu0
    %v2420 = vadd.f32 0.0, %v2419
    %2421 = vdwg.mxu0
    %2422 = vmatpush.msra.mxu0 0.0
    %2423 = vmatpush.msra.mxu0 0.0
    %2424 = vmatpush.msra.mxu0 0.0
    %2425 = vmatpush.msra.mxu0 0.0
    %2426 = vmatpush.msra.mxu0 0.0
    %2427 = vmatpush.msra.mxu0 0.0
    %2428 = vmatpush.msra.mxu0 0.0
    %2429 = vmatpush.msra.mxu0 0.0
    %2430 = vmatpush.msra.mxu0 0.0
    %2431 = vmatpush.msra.mxu0 0.0
    %2432 = vmatpush.msra.mxu0 0.0
    %2433 = vmatpush.msra.mxu0 0.0
    %2434 = vmatpush.msra.mxu0 0.0
    %2435 = vmatpush.msra.mxu0 0.0
    %2436 = vmatpush.msra.mxu0 %v2343
    %2437 = vmatpush.msra.mxu0 %v2339
    %2438 = vmatmul.f32.gmra.mxu0 %v2348
    %v2439 = vpop.f32.mrf.mxu0
    %v2440 = vadd.f32 0.0, %v2439
    %2441 = vmatmul.f32.gmra.mxu0 %v2351
    %v2442 = vpop.f32.mrf.mxu0
    %v2443 = vadd.f32 0.0, %v2442
    %2444 = vdwg.mxu0
    %v2445 = vadd.f32 %v2304, %v2371
    %v2446 = vadd.f32 %v2305, %v2394
    %v2447 = vadd.f32 %v2306, %v2417
    %v2448 = vadd.f32 %v2307, %v2440
    %v2449 = vadd.f32 %v2308, %v2374
    %v2450 = vadd.f32 %v2309, %v2397
    %v2451 = vadd.f32 %v2310, %v2420
    %v2452 = vadd.f32 %v2311, %v2443
    %2453 = vrot.lane.b32.xlu0 %v1366, 111
    %v2454 = vpop.permute.xlu0 %2453
    %2455 = vrot.lane.b32.xlu0 %v1370, 111
    %v2456 = vpop.permute.xlu0 %2455
    %2457 = vrot.lane.b32.xlu0 %v1367, 111
    %v2458 = vpop.permute.xlu0 %2457
    %2459 = vrot.lane.b32.xlu0 %v1371, 111
    %v2460 = vpop.permute.xlu0 %2459
    %2461 = vrot.lane.b32.xlu0 %v1368, 111
    %v2462 = vpop.permute.xlu0 %2461
    %2463 = vrot.lane.b32.xlu0 %v1372, 111
    %v2464 = vpop.permute.xlu0 %2463
    %2465 = vrot.lane.b32.xlu0 %v1369, 111
    %v2466 = vpop.permute.xlu0 %2465
    %2467 = vrot.lane.b32.xlu0 %v1373, 111
    %v2468 = vpop.permute.xlu0 %2467
    %v2469 = vsel %vm1216, %v2462, %v2466
    %v2470 = vsel %vm1216, %v2464, %v2468
    %v2471 = vsel %vm1216, %v2458, %v2462
    %v2472 = vsel %vm1216, %v2460, %v2464
    %v2473 = vsel %vm1216, %v2454, %v2458
    %v2474 = vsel %vm1216, %v2456, %v2460
    %v2475 = vsel %vm1216, %v2466, %v2454
    %v2476 = vsel %vm1216, %v2468, %v2456
    %v2477 = vmul.f32 %v2473, %v1225
    %v2478 = vmul.f32 %v2471, %v1226
    %v2479 = vmul.f32 %v2469, %v1227
    %v2480 = vmul.f32 %v2475, %v1228
    %v2481 = vmul.f32 %v2474, %v1225
    %v2482 = vmul.f32 %v2472, %v1226
    %v2483 = vmul.f32 %v2470, %v1227
    %v2484 = vmul.f32 %v2476, %v1228
    %s2485 = scalar_lea.vmem [#allocation7], 128
    %v2486 = vld [vmem:[%s2485] sm:$0xff]
    %v2487 = vld [vmem:[%s2485 + $0x8] sm:$0xff]
    %v2489 = vsel %vm127, %v2486, 0
    %v2492 = vsel %vm127, %v2487, 0
    %2494 = vmatpush.msra.mxu0 0.0
    %2495 = vmatpush.msra.mxu0 0.0
    %2496 = vmatpush.msra.mxu0 0.0
    %2497 = vmatpush.msra.mxu0 0.0
    %2498 = vmatpush.msra.mxu0 0.0
    %2499 = vmatpush.msra.mxu0 0.0
    %2500 = vmatpush.msra.mxu0 0.0
    %2501 = vmatpush.msra.mxu0 0.0
    %2502 = vmatpush.msra.mxu0 0.0
    %2503 = vmatpush.msra.mxu0 0.0
    %2504 = vmatpush.msra.mxu0 0.0
    %2505 = vmatpush.msra.mxu0 0.0
    %2506 = vmatpush.msra.mxu0 0.0
    %2507 = vmatpush.msra.mxu0 0.0
    %2508 = vmatpush.msra.mxu0 %v2481
    %2509 = vmatpush.msra.mxu0 %v2477
    %2510 = vmatmul.f32.gmra.mxu0 %v2489
    %v2511 = vpop.f32.mrf.mxu0
    %v2512 = vadd.f32 0.0, %v2511
    %2513 = vmatmul.f32.gmra.mxu0 %v2492
    %v2514 = vpop.f32.mrf.mxu0
    %v2515 = vadd.f32 0.0, %v2514
    %2516 = vdwg.mxu0
    %2517 = vmatpush.msra.mxu0 0.0
    %2518 = vmatpush.msra.mxu0 0.0
    %2519 = vmatpush.msra.mxu0 0.0
    %2520 = vmatpush.msra.mxu0 0.0
    %2521 = vmatpush.msra.mxu0 0.0
    %2522 = vmatpush.msra.mxu0 0.0
    %2523 = vmatpush.msra.mxu0 0.0
    %2524 = vmatpush.msra.mxu0 0.0
    %2525 = vmatpush.msra.mxu0 0.0
    %2526 = vmatpush.msra.mxu0 0.0
    %2527 = vmatpush.msra.mxu0 0.0
    %2528 = vmatpush.msra.mxu0 0.0
    %2529 = vmatpush.msra.mxu0 0.0
    %2530 = vmatpush.msra.mxu0 0.0
    %2531 = vmatpush.msra.mxu0 %v2482
    %2532 = vmatpush.msra.mxu0 %v2478
    %2533 = vmatmul.f32.gmra.mxu0 %v2489
    %v2534 = vpop.f32.mrf.mxu0
    %v2535 = vadd.f32 0.0, %v2534
    %2536 = vmatmul.f32.gmra.mxu0 %v2492
    %v2537 = vpop.f32.mrf.mxu0
    %v2538 = vadd.f32 0.0, %v2537
    %2539 = vdwg.mxu0
    %2540 = vmatpush.msra.mxu0 0.0
    %2541 = vmatpush.msra.mxu0 0.0
    %2542 = vmatpush.msra.mxu0 0.0
    %2543 = vmatpush.msra.mxu0 0.0
    %2544 = vmatpush.msra.mxu0 0.0
    %2545 = vmatpush.msra.mxu0 0.0
    %2546 = vmatpush.msra.mxu0 0.0
    %2547 = vmatpush.msra.mxu0 0.0
    %2548 = vmatpush.msra.mxu0 0.0
    %2549 = vmatpush.msra.mxu0 0.0
    %2550 = vmatpush.msra.mxu0 0.0
    %2551 = vmatpush.msra.mxu0 0.0
    %2552 = vmatpush.msra.mxu0 0.0
    %2553 = vmatpush.msra.mxu0 0.0
    %2554 = vmatpush.msra.mxu0 %v2483
    %2555 = vmatpush.msra.mxu0 %v2479
    %2556 = vmatmul.f32.gmra.mxu0 %v2489
    %v2557 = vpop.f32.mrf.mxu0
    %v2558 = vadd.f32 0.0, %v2557
    %2559 = vmatmul.f32.gmra.mxu0 %v2492
    %v2560 = vpop.f32.mrf.mxu0
    %v2561 = vadd.f32 0.0, %v2560
    %2562 = vdwg.mxu0
    %2563 = vmatpush.msra.mxu0 0.0
    %2564 = vmatpush.msra.mxu0 0.0
    %2565 = vmatpush.msra.mxu0 0.0
    %2566 = vmatpush.msra.mxu0 0.0
    %2567 = vmatpush.msra.mxu0 0.0
    %2568 = vmatpush.msra.mxu0 0.0
    %2569 = vmatpush.msra.mxu0 0.0
    %2570 = vmatpush.msra.mxu0 0.0
    %2571 = vmatpush.msra.mxu0 0.0
    %2572 = vmatpush.msra.mxu0 0.0
    %2573 = vmatpush.msra.mxu0 0.0
    %2574 = vmatpush.msra.mxu0 0.0
    %2575 = vmatpush.msra.mxu0 0.0
    %2576 = vmatpush.msra.mxu0 0.0
    %2577 = vmatpush.msra.mxu0 %v2484
    %2578 = vmatpush.msra.mxu0 %v2480
    %2579 = vmatmul.f32.gmra.mxu0 %v2489
    %v2580 = vpop.f32.mrf.mxu0
    %v2581 = vadd.f32 0.0, %v2580
    %2582 = vmatmul.f32.gmra.mxu0 %v2492
    %v2583 = vpop.f32.mrf.mxu0
    %v2584 = vadd.f32 0.0, %v2583
    %2585 = vdwg.mxu0
    %v2586 = vadd.f32 %v2445, %v2512
    %v2587 = vadd.f32 %v2446, %v2535
    %v2588 = vadd.f32 %v2447, %v2558
    %v2589 = vadd.f32 %v2448, %v2581
    %v2590 = vadd.f32 %v2449, %v2515
    %v2591 = vadd.f32 %v2450, %v2538
    %v2592 = vadd.f32 %v2451, %v2561
    %v2593 = vadd.f32 %v2452, %v2584
    %v2594 = vld [vmem:[%s5] sm:$0xff]
    %v2595 = vld [vmem:[%s5 + $0x8] sm:$0xff]
    %2597 = vset.pattern.permute.xlu0 0
    %2598 = vperm.xlu0 %2597, %v2594
    %v2599 = vpop.permute.xlu0 %2598
    %2602 = vset.pattern.permute.xlu0 0
    %2603 = vperm.xlu0 %2602, %v2595
    %v2604 = vpop.permute.xlu0 %2603
    %v2606 = vadd.f32 %v2586, %v2599
    %v2607 = vadd.f32 %v2587, %v2599
    %v2608 = vadd.f32 %v2588, %v2599
    %v2609 = vadd.f32 %v2589, %v2599
    %v2610 = vadd.f32 %v2590, %v2604
    %v2611 = vadd.f32 %v2591, %v2604
    %v2612 = vadd.f32 %v2592, %v2604
    %v2613 = vadd.f32 %v2593, %v2604
    %v2614 = vmax.f32 %v2606, 0.0
    %v2615 = vmax.f32 %v2607, 0.0
    %v2616 = vmax.f32 %v2608, 0.0
    %v2617 = vmax.f32 %v2609, 0.0
    %v2618 = vmax.f32 %v2610, 0.0
    %v2619 = vmax.f32 %v2611, 0.0
    %v2620 = vmax.f32 %v2612, 0.0
    %v2621 = vmax.f32 %v2613, 0.0
    %v2622 = vadd.f32 %v71, %v2614
    %v2623 = vadd.f32 %v72, %v2615
    %v2624 = vadd.f32 %v73, %v2616
    %v2625 = vadd.f32 %v74, %v2617
    %v2626 = vadd.f32 %v75, %v2618
    %v2627 = vadd.f32 %v76, %v2619
    %v2628 = vadd.f32 %v77, %v2620
    %v2629 = vadd.f32 %v78, %v2621
    %2630 = vst [vmem:[#allocation8] sm:$0xff] %v2622
    %2631 = vst [vmem:[#allocation8 + $0x8] sm:$0xff] %v2623
    %2632 = vst [vmem:[#allocation8 + $0x10] sm:$0xff] %v2624
    %2633 = vst [vmem:[#allocation8 + $0x18] sm:$0xff] %v2625
    %2634 = vst [vmem:[#allocation8 + $0x20] sm:$0xff] %v2626
    %2635 = vst [vmem:[#allocation8 + $0x28] sm:$0xff] %v2627
    %2636 = vst [vmem:[#allocation8 + $0x30] sm:$0xff] %v2628
    %2637 = vst [vmem:[#allocation8 + $0x38] sm:$0xff] %v2629
    // Predicated region
    $region38: #{tpu_custom_call.1} parent=1 // pred_check
      _
    $region39: #{tpu_custom_call.1} parent=1 // pred_check_branch
      %2639 = sbr.rel (0) target = $region41
    $region40: #{tpu_custom_call.1} parent=1 // pred_region
      %2641 = vsyncadd [#allocation4], 0
      %s2642 = sshll.u32 [#allocation8], 4
      %s2643 = int_to_ptr.vmem [resolvable:$true] %s2642
      %s2644 = sshll.u32 %s6, 4
      %s2645 = int_to_ptr.hbm [resolvable:$true] %s2644
      %2650 = dma.vmem_to_hbm [thread:$0]  %s2643, 1024, %s2645, [#allocation4], 512, 512, 32
    $region41: #{tpu_custom_call.1} parent=1 // pred_fallthru
      _
    // Predicated region
    $region42: #{tpu_custom_call.1} parent=1 // pred_check
      _
    $region43: #{tpu_custom_call.1} parent=1 // pred_check_branch
      %2652 = sbr.rel (0) target = $region45
    $region44: #{tpu_custom_call.1} parent=1 // pred_region
      %2654 = dma.done [#allocation4], 1024
    $region45: #{tpu_custom_call.1} parent=1 // pred_fallthru
      _
    %2655 = vsyncpa [#allocation3], 1
    %2656 = vsyncpa [#allocation6], 1
    %2657 = vsyncpa [#allocation4], 1

</llo_original>
